<compile_context>
chip_gen: v7x
topology: tpu7x:2x2x1
jax: 0.10.0
libtpu: 0.0.40
codegen_flags: <defaults>
</compile_context>

<pallas_src>
import functools

import jax
import jax.numpy as jnp
from jax import lax
from jax.experimental import pallas as pl
from jax.experimental.pallas import tpu as pltpu


_NEG_LARGE = -1e30  # "minus infinity" without inf arithmetic


def _logits_chunk(x_ref, base, cs, w1_ref, b1_ref, w2_ref, b2_ref):
    """fc1 -> ReLU -> fc2 on a batch-dense (cs, 128) sub-chunk.

    x_ref: (4, S, 128) VMEM ref; weights / biases are SMEM refs read as
    scalars and broadcast on the VPU.  fc2 is fused into the fc1 loop so only
    one hidden row is live at a time.  Returns 3 arrays of shape (cs, 128).
    """
    xr = [x_ref[f, pl.ds(base, cs), :] for f in range(4)]       # 4 x (cs, 128)
    acc = [None, None, None]
    for h in range(8):
        hk = xr[0] * w1_ref[h, 0]
        for f in range(1, 4):
            hk = hk + xr[f] * w1_ref[h, f]
        hk = jnp.maximum(hk + b1_ref[h], 0.0)                   # (cs, 128)
        for o in range(3):
            t = hk * w2_ref[o, h]
            acc[o] = (t + b2_ref[o]) if h == 0 else (acc[o] + t)
    return acc                                                  # 3 x (cs, 128)


def _net_kernel(x_ref, w1_ref, b1_ref, w2_ref, b2_ref, o_ref,
                m_sc, s_sc, c_sc, *, n, tn, cs, num_tiles, last_has_pad):
    phase = pl.program_id(0)      # 0: softmax stats, 1: normalize + write
    j = pl.program_id(1)          # batch tile index
    S = tn // 128                 # sublane rows per tile
    n_chunks = S // cs
    is_last = j == (num_tiles - 1)

    def for_each_chunk(fn):
        if n_chunks == 1:
            fn(0)                                   # fully static fast path
        else:
            @pl.loop(0, n_chunks)
            def _(ci):
                fn(pl.multiple_of(ci * cs, cs))

    def pad_mask(base):
        row = lax.broadcasted_iota(jnp.int32, (cs, 128), 0)
        lane = lax.broadcasted_iota(jnp.int32, (cs, 128), 1)
        col = (j * S + base + row) * 128 + lane     # flattened batch index
        return col < n

    def stats_tile(masked):
        def chunk(base):
            lg = _logits_chunk(x_ref, base, cs, w1_ref, b1_ref, w2_ref, b2_ref)
            if masked:
                msk = pad_mask(base)
                lg = [jnp.where(msk, l, _NEG_LARGE) for l in lg]
            for k in range(3):
                m_old = m_sc[k]                                 # (cs, 128)
                m_new = jnp.maximum(m_old, lg[k])
                s_sc[k] = (s_sc[k] * jnp.exp(m_old - m_new)
                           + jnp.exp(lg[k] - m_new))
                m_sc[k] = m_new
        for_each_chunk(chunk)

    def finalize():
        # Collapse the per-(sublane, lane) running stats to a single
        # c = m + log(sum exp) per class (log-sum-exp merge).
        for k in range(3):
            mk = m_sc[k]                                        # (cs, 128)
            sk = s_sc[k]
            m1 = jnp.max(mk, axis=0, keepdims=True)             # (1, 128)
            s1 = jnp.sum(sk * jnp.exp(mk - m1), axis=0, keepdims=True)
            m2 = jnp.max(m1, axis=1, keepdims=True)             # (1, 1)
            s2 = jnp.sum(s1 * jnp.exp(m1 - m2), axis=1, keepdims=True)
            c = m2 + jnp.log(s2)                                # (1, 1)
            c_sc[k] = jnp.broadcast_to(c, (1, 128))

    def norm_tile(masked):
        def chunk(base):
            lg = _logits_chunk(x_ref, base, cs, w1_ref, b1_ref, w2_ref, b2_ref)
            msk = pad_mask(base) if masked else None
            for k in range(3):
                v = jnp.exp(lg[k] - c_sc[k])                    # (cs, 128)
                if masked:
                    v = jnp.where(msk, v, 0.0)
                o_ref[k, pl.ds(base, cs), :] = v
        for_each_chunk(chunk)

    # ---- phase 0: online stats over the whole (padded) batch ----
    @pl.when((phase == 0) & (j == 0))
    def _():
        m_sc[...] = jnp.full_like(m_sc, _NEG_LARGE)
        s_sc[...] = jnp.zeros_like(s_sc)

    if num_tiles > 1:
        @pl.when((phase == 0) & jnp.logical_not(is_last))
        def _():
            stats_tile(False)

        @pl.when((phase == 1) & jnp.logical_not(is_last))
        def _():
            norm_tile(False)

    @pl.when((phase == 0) & is_last)
    def _():
        stats_tile(last_has_pad)
        finalize()

    # ---- phase 1: normalize and write batch-dense output blocks ----
    @pl.when((phase == 1) & is_last)
    def _():
        norm_tile(last_has_pad)


def _round_up(a, b):
    return ((a + b - 1) // b) * b


def net_forward(x, w1, b1, w2, b2, *, tn_target=131072):
    """Forward pass of `Net` with the hot path in a single Pallas kernel."""
    x2d = x.reshape(-1, 4).astype(jnp.float32)           # x.view(-1, 4): (N, 4)
    n = x2d.shape[0]

    # Tile width in batch columns: multiple of 1024 so blocks are (8k, 128).
    tn_target = max(1024, _round_up(int(tn_target), 1024))
    tn = min(tn_target, _round_up(n, 1024))
    n_pad = _round_up(n, tn)
    num_tiles = n_pad // tn
    S = tn // 128                                         # sublane rows / tile
    cs = 32 if S % 32 == 0 else 8                         # inner sub-chunk rows

    # Batch-dense layout: (4, n_pad) -> (4, n_pad // 128, 128) (free reshape).
    xt = jnp.pad(x2d.T, ((0, 0), (0, n_pad - n)))
    xt = xt.reshape(4, n_pad // 128, 128)

    w1 = w1.astype(jnp.float32)                           # (8, 4) PyTorch (out, in)
    b1 = b1.astype(jnp.float32)                           # (8,)
    w2 = w2.astype(jnp.float32)                           # (3, 8)
    b2 = b2.astype(jnp.float32)                           # (3,)

    smem = pl.BlockSpec(memory_space=pltpu.MemorySpace.SMEM)

    kernel = functools.partial(
        _net_kernel, n=n, tn=tn, cs=cs,
        num_tiles=num_tiles, last_has_pad=(n_pad != n))

    flops_per_col = 2 * (2 * (4 * 8 + 8 * 3))             # both phases
    out3 = pl.pallas_call(
        kernel,
        out_shape=jax.ShapeDtypeStruct((3, n_pad // 128, 128), jnp.float32),
        grid_spec=pltpu.PrefetchScalarGridSpec(
            num_scalar_prefetch=0,
            grid=(2, num_tiles),                           # (phase, batch tile)
            in_specs=[pl.BlockSpec((4, S, 128), lambda p, j: (0, j, 0)),
                      smem, smem, smem, smem],
            # Phase 0 never writes; map all its steps to block 0 so each
            # output block is DMA'd back exactly once (after its phase-1 step).
            out_specs=pl.BlockSpec((3, S, 128), lambda p, j: (0, j * p, 0)),
            scratch_shapes=[pltpu.VMEM((3, cs, 128), jnp.float32),   # running max
                            pltpu.VMEM((3, cs, 128), jnp.float32),   # running sum exp
                            pltpu.VMEM((3, 1, 128), jnp.float32)]),  # c = m + log s
        compiler_params=pltpu.CompilerParams(
            dimension_semantics=("arbitrary", "arbitrary")),
        cost_estimate=pl.CostEstimate(
            flops=flops_per_col * n_pad,
            transcendentals=9 * n_pad,
            bytes_accessed=(2 * 16 + 12) * n_pad),
    )(xt, w1, b1, w2, b2)

    return out3.reshape(3, n_pad)[:, :n].T                 # back to (N, 3)


def reference_forward(x, w1, b1, w2, b2):
    """Pure-JAX reference matching the PyTorch module semantics."""
    x2d = x.reshape(-1, 4).astype(jnp.float32)
    h = jnp.maximum(x2d @ w1.T + b1, 0.0)
    logits = h @ w2.T + b2
    m = jnp.max(logits, axis=0, keepdims=True)
    e = jnp.exp(logits - m)
    return e / jnp.sum(e, axis=0, keepdims=True)           # softmax over batch


if __name__ == "__main__":
    key = jax.random.PRNGKey(0)
    kx, k1, k2, k3, k4, kx2, kx3, kx4 = jax.random.split(key, 8)

    # PyTorch Linear shapes: weight (out, in), bias (out,).
    w1 = jax.random.normal(k1, (8, 4), dtype=jnp.float32) * 0.5   # fc1.weight
    b1 = jax.random.normal(k2, (8,), dtype=jnp.float32) * 0.1     # fc1.bias
    w2 = jax.random.normal(k3, (3, 8), dtype=jnp.float32) * 0.5   # fc2.weight
    b2 = jax.random.normal(k4, (3,), dtype=jnp.float32) * 0.1     # fc2.bias

    # Test 1: tiny input consistent with view(-1, 4): (2, 4, 4) -> (8, 4).
    x = jax.random.normal(kx, (2, 4, 4), dtype=jnp.float32)
    out = jax.block_until_ready(net_forward(x, w1, b1, w2, b2))
    ref = reference_forward(x, w1, b1, w2, b2)
    assert out.shape == (8, 3), out.shape
    assert jnp.allclose(out, ref, atol=1e-5, rtol=1e-4), "mismatch (small)"
    assert jnp.allclose(jnp.sum(out, axis=0), jnp.ones((3,)), atol=1e-4)

    # Test 2: multiple tiles + online merge + last-tile padding mask.
    x2 = jax.random.normal(kx2, (3000, 4), dtype=jnp.float32)
    out2 = jax.block_until_ready(net_forward(x2, w1, b1, w2, b2, tn_target=1024))
    ref2 = reference_forward(x2, w1, b1, w2, b2)
    assert out2.shape == (3000, 3), out2.shape
    assert jnp.allclose(out2, ref2, atol=1e-5, rtol=1e-4), "mismatch (multi-tile)"
    assert jnp.allclose(jnp.sum(out2, axis=0), jnp.ones((3,)), atol=1e-4)

    # Test 3: batch is an exact multiple of the tile width (no padding path).
    x3 = jax.random.normal(kx3, (2048, 4), dtype=jnp.float32)
    out3 = jax.block_until_ready(net_forward(x3, w1, b1, w2, b2, tn_target=1024))
    ref3 = reference_forward(x3, w1, b1, w2, b2)
    assert jnp.allclose(out3, ref3, atol=1e-5, rtol=1e-4), "mismatch (exact tiles)"

    # Test 4: one large tile split into several inner sub-chunks (dynamic loop).
    x4 = jax.random.normal(kx4, (5000, 4), dtype=jnp.float32)
    out4 = jax.block_until_ready(net_forward(x4, w1, b1, w2, b2, tn_target=8192))
    ref4 = reference_forward(x4, w1, b1, w2, b2)
    assert jnp.allclose(out4, ref4, atol=1e-5, rtol=1e-4), "mismatch (chunked tile)"
    assert jnp.allclose(jnp.sum(out4, axis=0), jnp.ones((3,)), atol=1e-4)

    print("KERNEL_OK")
</pallas_src>

<mosaic_0001>
module attributes {stable_mosaic.version = 11 : i64} {
  func.func @_net_kernel(%arg0: i32, %arg1: i32, %arg2: memref<4x8x128xf32, #tpu.memory_space<vmem>>, %arg3: memref<8x4xf32, #tpu.memory_space<smem>>, %arg4: memref<8xf32, #tpu.memory_space<smem>>, %arg5: memref<3x8xf32, #tpu.memory_space<smem>>, %arg6: memref<3xf32, #tpu.memory_space<smem>>, %arg7: memref<3x8x128xf32, #tpu.memory_space<vmem>>, %arg8: memref<3x8x128xf32, #tpu.memory_space<vmem>>, %arg9: memref<3x8x128xf32, #tpu.memory_space<vmem>>, %arg10: memref<3x1x128xf32, #tpu.memory_space<vmem>>) attributes {dimension_semantics = [#tpu.dimension_semantics<arbitrary>, #tpu.dimension_semantics<arbitrary>], iteration_bounds = array<i64: 2, 1>, scalar_prefetch = 0 : i64, scratch_operands = 3 : i64, tpu.core_type = #tpu.core_type<tc>, window_params = [{transform_indices = @transform_0, window_bounds = array<i64: 4, 8, 128>}, {transform_indices = @transform_1, window_bounds = array<i64: 8, 4>}, {transform_indices = @transform_2, window_bounds = array<i64: 8>}, {transform_indices = @transform_3, window_bounds = array<i64: 3, 8>}, {transform_indices = @transform_4, window_bounds = array<i64: 3>}, {transform_indices = @transform_5, window_bounds = array<i64: 3, 8, 128>}]} {
    %c0_i32 = arith.constant 0 : i32
    %0 = arith.cmpi eq, %arg1, %c0_i32 : i32
    %c0_i32_0 = arith.constant 0 : i32
    %1 = arith.cmpi eq, %arg0, %c0_i32_0 : i32
    %c0_i32_1 = arith.constant 0 : i32
    %2 = arith.cmpi eq, %arg1, %c0_i32_1 : i32
    %3 = arith.andi %1, %2 : i1
    %4 = arith.extui %3 : i1 to i32
    %c0_i32_2 = arith.constant 0 : i32
    %5 = arith.cmpi ne, %4, %c0_i32_2 : i32
    scf.if %5 {
      %cst = arith.constant -1.000000e+30 : f32
      %14 = vector.broadcast %cst : f32 to vector<3x8x128xf32>
      %c0 = arith.constant 0 : index
      %c0_6 = arith.constant 0 : index
      %c0_7 = arith.constant 0 : index
      %15 = vector.load %arg8[%c0, %c0_6, %c0_7] : memref<3x8x128xf32, #tpu.memory_space<vmem>>, vector<3x8x128xf32>
      tpu.vector_store %arg8[%c0, %c0_6, %c0_7], %14 {strides = array<i32>} : memref<3x8x128xf32, #tpu.memory_space<vmem>>, vector<3x8x128xf32>,
      %cst_8 = arith.constant 0.000000e+00 : f32
      %16 = vector.broadcast %cst_8 : f32 to vector<3x8x128xf32>
      %c0_9 = arith.constant 0 : index
      %c0_10 = arith.constant 0 : index
      %c0_11 = arith.constant 0 : index
      %17 = vector.load %arg9[%c0_9, %c0_10, %c0_11] : memref<3x8x128xf32, #tpu.memory_space<vmem>>, vector<3x8x128xf32>
      tpu.vector_store %arg9[%c0_9, %c0_10, %c0_11], %16 {strides = array<i32>} : memref<3x8x128xf32, #tpu.memory_space<vmem>>, vector<3x8x128xf32>,
    } else {
    }
    %c0_i32_3 = arith.constant 0 : i32
    %6 = arith.cmpi eq, %arg0, %c0_i32_3 : i32
    %7 = arith.andi %6, %0 : i1
    %8 = arith.extui %7 : i1 to i32
    %c0_i32_4 = arith.constant 0 : i32
    %9 = arith.cmpi ne, %8, %c0_i32_4 : i32
    scf.if %9 {
      %c0 = arith.constant 0 : index
      %c0_6 = arith.constant 0 : index
      %c0_7 = arith.constant 0 : index
      %14 = vector.load %arg2[%c0, %c0_6, %c0_7] : memref<4x8x128xf32, #tpu.memory_space<vmem>>, vector<1x8x128xf32>
      %15 = vector.shape_cast %14 : vector<1x8x128xf32> to vector<8x128xf32>
      %c1 = arith.constant 1 : index
      %c0_8 = arith.constant 0 : index
      %c0_9 = arith.constant 0 : index
      %16 = vector.load %arg2[%c1, %c0_8, %c0_9] : memref<4x8x128xf32, #tpu.memory_space<vmem>>, vector<1x8x128xf32>
      %17 = vector.shape_cast %16 : vector<1x8x128xf32> to vector<8x128xf32>
      %c2 = arith.constant 2 : index
      %c0_10 = arith.constant 0 : index
      %c0_11 = arith.constant 0 : index
      %18 = vector.load %arg2[%c2, %c0_10, %c0_11] : memref<4x8x128xf32, #tpu.memory_space<vmem>>, vector<1x8x128xf32>
      %19 = vector.shape_cast %18 : vector<1x8x128xf32> to vector<8x128xf32>
      %c3 = arith.constant 3 : index
      %c0_12 = arith.constant 0 : index
      %c0_13 = arith.constant 0 : index
      %20 = vector.load %arg2[%c3, %c0_12, %c0_13] : memref<4x8x128xf32, #tpu.memory_space<vmem>>, vector<1x8x128xf32>
      %21 = vector.shape_cast %20 : vector<1x8x128xf32> to vector<8x128xf32>
      %c0_14 = arith.constant 0 : index
      %c0_15 = arith.constant 0 : index
      %22 = memref.load %arg3[%c0_14, %c0_15] : memref<8x4xf32, #tpu.memory_space<smem>>
      %23 = vector.broadcast %22 : f32 to vector<8x128xf32>
      %24 = arith.mulf %15, %23 : vector<8x128xf32>
      %c0_16 = arith.constant 0 : index
      %c1_17 = arith.constant 1 : index
      %25 = memref.load %arg3[%c0_16, %c1_17] : memref<8x4xf32, #tpu.memory_space<smem>>
      %26 = vector.broadcast %25 : f32 to vector<8x128xf32>
      %27 = arith.mulf %17, %26 : vector<8x128xf32>
      %28 = arith.addf %24, %27 : vector<8x128xf32>
      %c0_18 = arith.constant 0 : index
      %c2_19 = arith.constant 2 : index
      %29 = memref.load %arg3[%c0_18, %c2_19] : memref<8x4xf32, #tpu.memory_space<smem>>
      %30 = vector.broadcast %29 : f32 to vector<8x128xf32>
      %31 = arith.mulf %19, %30 : vector<8x128xf32>
      %32 = arith.addf %28, %31 : vector<8x128xf32>
      %c0_20 = arith.constant 0 : index
      %c3_21 = arith.constant 3 : index
      %33 = memref.load %arg3[%c0_20, %c3_21] : memref<8x4xf32, #tpu.memory_space<smem>>
      %34 = vector.broadcast %33 : f32 to vector<8x128xf32>
      %35 = arith.mulf %21, %34 : vector<8x128xf32>
      %36 = arith.addf %32, %35 : vector<8x128xf32>
      %c0_22 = arith.constant 0 : index
      %37 = memref.load %arg4[%c0_22] : memref<8xf32, #tpu.memory_space<smem>>
      %38 = vector.broadcast %37 : f32 to vector<8x128xf32>
      %39 = arith.addf %36, %38 : vector<8x128xf32>
      %cst = arith.constant 0.000000e+00 : f32
      %40 = vector.broadcast %cst : f32 to vector<8x128xf32>
      %41 = arith.maximumf %39, %40 : vector<8x128xf32>
      %c0_23 = arith.constant 0 : index
      %c0_24 = arith.constant 0 : index
      %42 = memref.load %arg5[%c0_23, %c0_24] : memref<3x8xf32, #tpu.memory_space<smem>>
      %43 = vector.broadcast %42 : f32 to vector<8x128xf32>
      %44 = arith.mulf %41, %43 : vector<8x128xf32>
      %c0_25 = arith.constant 0 : index
      %45 = memref.load %arg6[%c0_25] : memref<3xf32, #tpu.memory_space<smem>>
      %46 = vector.broadcast %45 : f32 to vector<8x128xf32>
      %47 = arith.addf %44, %46 : vector<8x128xf32>
      %c1_26 = arith.constant 1 : index
      %c0_27 = arith.constant 0 : index
      %48 = memref.load %arg5[%c1_26, %c0_27] : memref<3x8xf32, #tpu.memory_space<smem>>
      %49 = vector.broadcast %48 : f32 to vector<8x128xf32>
      %50 = arith.mulf %41, %49 : vector<8x128xf32>
      %c1_28 = arith.constant 1 : index
      %51 = memref.load %arg6[%c1_28] : memref<3xf32, #tpu.memory_space<smem>>
      %52 = vector.broadcast %51 : f32 to vector<8x128xf32>
      %53 = arith.addf %50, %52 : vector<8x128xf32>
      %c2_29 = arith.constant 2 : index
      %c0_30 = arith.constant 0 : index
      %54 = memref.load %arg5[%c2_29, %c0_30] : memref<3x8xf32, #tpu.memory_space<smem>>
      %55 = vector.broadcast %54 : f32 to vector<8x128xf32>
      %56 = arith.mulf %41, %55 : vector<8x128xf32>
      %c2_31 = arith.constant 2 : index
      %57 = memref.load %arg6[%c2_31] : memref<3xf32, #tpu.memory_space<smem>>
      %58 = vector.broadcast %57 : f32 to vector<8x128xf32>
      %59 = arith.addf %56, %58 : vector<8x128xf32>
      %c1_32 = arith.constant 1 : index
      %c0_33 = arith.constant 0 : index
      %60 = memref.load %arg3[%c1_32, %c0_33] : memref<8x4xf32, #tpu.memory_space<smem>>
      %61 = vector.broadcast %60 : f32 to vector<8x128xf32>
      %62 = arith.mulf %15, %61 : vector<8x128xf32>
      %c1_34 = arith.constant 1 : index
      %c1_35 = arith.constant 1 : index
      %63 = memref.load %arg3[%c1_34, %c1_35] : memref<8x4xf32, #tpu.memory_space<smem>>
      %64 = vector.broadcast %63 : f32 to vector<8x128xf32>
      %65 = arith.mulf %17, %64 : vector<8x128xf32>
      %66 = arith.addf %62, %65 : vector<8x128xf32>
      %c1_36 = arith.constant 1 : index
      %c2_37 = arith.constant 2 : index
      %67 = memref.load %arg3[%c1_36, %c2_37] : memref<8x4xf32, #tpu.memory_space<smem>>
      %68 = vector.broadcast %67 : f32 to vector<8x128xf32>
      %69 = arith.mulf %19, %68 : vector<8x128xf32>
      %70 = arith.addf %66, %69 : vector<8x128xf32>
      %c1_38 = arith.constant 1 : index
      %c3_39 = arith.constant 3 : index
      %71 = memref.load %arg3[%c1_38, %c3_39] : memref<8x4xf32, #tpu.memory_space<smem>>
      %72 = vector.broadcast %71 : f32 to vector<8x128xf32>
      %73 = arith.mulf %21, %72 : vector<8x128xf32>
      %74 = arith.addf %70, %73 : vector<8x128xf32>
      %c1_40 = arith.constant 1 : index
      %75 = memref.load %arg4[%c1_40] : memref<8xf32, #tpu.memory_space<smem>>
      %76 = vector.broadcast %75 : f32 to vector<8x128xf32>
      %77 = arith.addf %74, %76 : vector<8x128xf32>
      %cst_41 = arith.constant 0.000000e+00 : f32
      %78 = vector.broadcast %cst_41 : f32 to vector<8x128xf32>
      %79 = arith.maximumf %77, %78 : vector<8x128xf32>
      %c0_42 = arith.constant 0 : index
      %c1_43 = arith.constant 1 : index
      %80 = memref.load %arg5[%c0_42, %c1_43] : memref<3x8xf32, #tpu.memory_space<smem>>
      %81 = vector.broadcast %80 : f32 to vector<8x128xf32>
      %82 = arith.mulf %79, %81 : vector<8x128xf32>
      %83 = arith.addf %47, %82 : vector<8x128xf32>
      %c1_44 = arith.constant 1 : index
      %c1_45 = arith.constant 1 : index
      %84 = memref.load %arg5[%c1_44, %c1_45] : memref<3x8xf32, #tpu.memory_space<smem>>
      %85 = vector.broadcast %84 : f32 to vector<8x128xf32>
      %86 = arith.mulf %79, %85 : vector<8x128xf32>
      %87 = arith.addf %53, %86 : vector<8x128xf32>
      %c2_46 = arith.constant 2 : index
      %c1_47 = arith.constant 1 : index
      %88 = memref.load %arg5[%c2_46, %c1_47] : memref<3x8xf32, #tpu.memory_space<smem>>
      %89 = vector.broadcast %88 : f32 to vector<8x128xf32>
      %90 = arith.mulf %79, %89 : vector<8x128xf32>
      %91 = arith.addf %59, %90 : vector<8x128xf32>
      %c2_48 = arith.constant 2 : index
      %c0_49 = arith.constant 0 : index
      %92 = memref.load %arg3[%c2_48, %c0_49] : memref<8x4xf32, #tpu.memory_space<smem>>
      %93 = vector.broadcast %92 : f32 to vector<8x128xf32>
      %94 = arith.mulf %15, %93 : vector<8x128xf32>
      %c2_50 = arith.constant 2 : index
      %c1_51 = arith.constant 1 : index
      %95 = memref.load %arg3[%c2_50, %c1_51] : memref<8x4xf32, #tpu.memory_space<smem>>
      %96 = vector.broadcast %95 : f32 to vector<8x128xf32>
      %97 = arith.mulf %17, %96 : vector<8x128xf32>
      %98 = arith.addf %94, %97 : vector<8x128xf32>
      %c2_52 = arith.constant 2 : index
      %c2_53 = arith.constant 2 : index
      %99 = memref.load %arg3[%c2_52, %c2_53] : memref<8x4xf32, #tpu.memory_space<smem>>
      %100 = vector.broadcast %99 : f32 to vector<8x128xf32>
      %101 = arith.mulf %19, %100 : vector<8x128xf32>
      %102 = arith.addf %98, %101 : vector<8x128xf32>
      %c2_54 = arith.constant 2 : index
      %c3_55 = arith.constant 3 : index
      %103 = memref.load %arg3[%c2_54, %c3_55] : memref<8x4xf32, #tpu.memory_space<smem>>
      %104 = vector.broadcast %103 : f32 to vector<8x128xf32>
      %105 = arith.mulf %21, %104 : vector<8x128xf32>
      %106 = arith.addf %102, %105 : vector<8x128xf32>
      %c2_56 = arith.constant 2 : index
      %107 = memref.load %arg4[%c2_56] : memref<8xf32, #tpu.memory_space<smem>>
      %108 = vector.broadcast %107 : f32 to vector<8x128xf32>
      %109 = arith.addf %106, %108 : vector<8x128xf32>
      %cst_57 = arith.constant 0.000000e+00 : f32
      %110 = vector.broadcast %cst_57 : f32 to vector<8x128xf32>
      %111 = arith.maximumf %109, %110 : vector<8x128xf32>
      %c0_58 = arith.constant 0 : index
      %c2_59 = arith.constant 2 : index
      %112 = memref.load %arg5[%c0_58, %c2_59] : memref<3x8xf32, #tpu.memory_space<smem>>
      %113 = vector.broadcast %112 : f32 to vector<8x128xf32>
      %114 = arith.mulf %111, %113 : vector<8x128xf32>
      %115 = arith.addf %83, %114 : vector<8x128xf32>
      %c1_60 = arith.constant 1 : index
      %c2_61 = arith.constant 2 : index
      %116 = memref.load %arg5[%c1_60, %c2_61] : memref<3x8xf32, #tpu.memory_space<smem>>
      %117 = vector.broadcast %116 : f32 to vector<8x128xf32>
      %118 = arith.mulf %111, %117 : vector<8x128xf32>
      %119 = arith.addf %87, %118 : vector<8x128xf32>
      %c2_62 = arith.constant 2 : index
      %c2_63 = arith.constant 2 : index
      %120 = memref.load %arg5[%c2_62, %c2_63] : memref<3x8xf32, #tpu.memory_space<smem>>
      %121 = vector.broadcast %120 : f32 to vector<8x128xf32>
      %122 = arith.mulf %111, %121 : vector<8x128xf32>
      %123 = arith.addf %91, %122 : vector<8x128xf32>
      %c3_64 = arith.constant 3 : index
      %c0_65 = arith.constant 0 : index
      %124 = memref.load %arg3[%c3_64, %c0_65] : memref<8x4xf32, #tpu.memory_space<smem>>
      %125 = vector.broadcast %124 : f32 to vector<8x128xf32>
      %126 = arith.mulf %15, %125 : vector<8x128xf32>
      %c3_66 = arith.constant 3 : index
      %c1_67 = arith.constant 1 : index
      %127 = memref.load %arg3[%c3_66, %c1_67] : memref<8x4xf32, #tpu.memory_space<smem>>
      %128 = vector.broadcast %127 : f32 to vector<8x128xf32>
      %129 = arith.mulf %17, %128 : vector<8x128xf32>
      %130 = arith.addf %126, %129 : vector<8x128xf32>
      %c3_68 = arith.constant 3 : index
      %c2_69 = arith.constant 2 : index
      %131 = memref.load %arg3[%c3_68, %c2_69] : memref<8x4xf32, #tpu.memory_space<smem>>
      %132 = vector.broadcast %131 : f32 to vector<8x128xf32>
      %133 = arith.mulf %19, %132 : vector<8x128xf32>
      %134 = arith.addf %130, %133 : vector<8x128xf32>
      %c3_70 = arith.constant 3 : index
      %c3_71 = arith.constant 3 : index
      %135 = memref.load %arg3[%c3_70, %c3_71] : memref<8x4xf32, #tpu.memory_space<smem>>
      %136 = vector.broadcast %135 : f32 to vector<8x128xf32>
      %137 = arith.mulf %21, %136 : vector<8x128xf32>
      %138 = arith.addf %134, %137 : vector<8x128xf32>
      %c3_72 = arith.constant 3 : index
      %139 = memref.load %arg4[%c3_72] : memref<8xf32, #tpu.memory_space<smem>>
      %140 = vector.broadcast %139 : f32 to vector<8x128xf32>
      %141 = arith.addf %138, %140 : vector<8x128xf32>
      %cst_73 = arith.constant 0.000000e+00 : f32
      %142 = vector.broadcast %cst_73 : f32 to vector<8x128xf32>
      %143 = arith.maximumf %141, %142 : vector<8x128xf32>
      %c0_74 = arith.constant 0 : index
      %c3_75 = arith.constant 3 : index
      %144 = memref.load %arg5[%c0_74, %c3_75] : memref<3x8xf32, #tpu.memory_space<smem>>
      %145 = vector.broadcast %144 : f32 to vector<8x128xf32>
      %146 = arith.mulf %143, %145 : vector<8x128xf32>
      %147 = arith.addf %115, %146 : vector<8x128xf32>
      %c1_76 = arith.constant 1 : index
      %c3_77 = arith.constant 3 : index
      %148 = memref.load %arg5[%c1_76, %c3_77] : memref<3x8xf32, #tpu.memory_space<smem>>
      %149 = vector.broadcast %148 : f32 to vector<8x128xf32>
      %150 = arith.mulf %143, %149 : vector<8x128xf32>
      %151 = arith.addf %119, %150 : vector<8x128xf32>
      %c2_78 = arith.constant 2 : index
      %c3_79 = arith.constant 3 : index
      %152 = memref.load %arg5[%c2_78, %c3_79] : memref<3x8xf32, #tpu.memory_space<smem>>
      %153 = vector.broadcast %152 : f32 to vector<8x128xf32>
      %154 = arith.mulf %143, %153 : vector<8x128xf32>
      %155 = arith.addf %123, %154 : vector<8x128xf32>
      %c4 = arith.constant 4 : index
      %c0_80 = arith.constant 0 : index
      %156 = memref.load %arg3[%c4, %c0_80] : memref<8x4xf32, #tpu.memory_space<smem>>
      %157 = vector.broadcast %156 : f32 to vector<8x128xf32>
      %158 = arith.mulf %15, %157 : vector<8x128xf32>
      %c4_81 = arith.constant 4 : index
      %c1_82 = arith.constant 1 : index
      %159 = memref.load %arg3[%c4_81, %c1_82] : memref<8x4xf32, #tpu.memory_space<smem>>
      %160 = vector.broadcast %159 : f32 to vector<8x128xf32>
      %161 = arith.mulf %17, %160 : vector<8x128xf32>
      %162 = arith.addf %158, %161 : vector<8x128xf32>
      %c4_83 = arith.constant 4 : index
      %c2_84 = arith.constant 2 : index
      %163 = memref.load %arg3[%c4_83, %c2_84] : memref<8x4xf32, #tpu.memory_space<smem>>
      %164 = vector.broadcast %163 : f32 to vector<8x128xf32>
      %165 = arith.mulf %19, %164 : vector<8x128xf32>
      %166 = arith.addf %162, %165 : vector<8x128xf32>
      %c4_85 = arith.constant 4 : index
      %c3_86 = arith.constant 3 : index
      %167 = memref.load %arg3[%c4_85, %c3_86] : memref<8x4xf32, #tpu.memory_space<smem>>
      %168 = vector.broadcast %167 : f32 to vector<8x128xf32>
      %169 = arith.mulf %21, %168 : vector<8x128xf32>
      %170 = arith.addf %166, %169 : vector<8x128xf32>
      %c4_87 = arith.constant 4 : index
      %171 = memref.load %arg4[%c4_87] : memref<8xf32, #tpu.memory_space<smem>>
      %172 = vector.broadcast %171 : f32 to vector<8x128xf32>
      %173 = arith.addf %170, %172 : vector<8x128xf32>
      %cst_88 = arith.constant 0.000000e+00 : f32
      %174 = vector.broadcast %cst_88 : f32 to vector<8x128xf32>
      %175 = arith.maximumf %173, %174 : vector<8x128xf32>
      %c0_89 = arith.constant 0 : index
      %c4_90 = arith.constant 4 : index
      %176 = memref.load %arg5[%c0_89, %c4_90] : memref<3x8xf32, #tpu.memory_space<smem>>
      %177 = vector.broadcast %176 : f32 to vector<8x128xf32>
      %178 = arith.mulf %175, %177 : vector<8x128xf32>
      %179 = arith.addf %147, %178 : vector<8x128xf32>
      %c1_91 = arith.constant 1 : index
      %c4_92 = arith.constant 4 : index
      %180 = memref.load %arg5[%c1_91, %c4_92] : memref<3x8xf32, #tpu.memory_space<smem>>
      %181 = vector.broadcast %180 : f32 to vector<8x128xf32>
      %182 = arith.mulf %175, %181 : vector<8x128xf32>
      %183 = arith.addf %151, %182 : vector<8x128xf32>
      %c2_93 = arith.constant 2 : index
      %c4_94 = arith.constant 4 : index
      %184 = memref.load %arg5[%c2_93, %c4_94] : memref<3x8xf32, #tpu.memory_space<smem>>
      %185 = vector.broadcast %184 : f32 to vector<8x128xf32>
      %186 = arith.mulf %175, %185 : vector<8x128xf32>
      %187 = arith.addf %155, %186 : vector<8x128xf32>
      %c5 = arith.constant 5 : index
      %c0_95 = arith.constant 0 : index
      %188 = memref.load %arg3[%c5, %c0_95] : memref<8x4xf32, #tpu.memory_space<smem>>
      %189 = vector.broadcast %188 : f32 to vector<8x128xf32>
      %190 = arith.mulf %15, %189 : vector<8x128xf32>
      %c5_96 = arith.constant 5 : index
      %c1_97 = arith.constant 1 : index
      %191 = memref.load %arg3[%c5_96, %c1_97] : memref<8x4xf32, #tpu.memory_space<smem>>
      %192 = vector.broadcast %191 : f32 to vector<8x128xf32>
      %193 = arith.mulf %17, %192 : vector<8x128xf32>
      %194 = arith.addf %190, %193 : vector<8x128xf32>
      %c5_98 = arith.constant 5 : index
      %c2_99 = arith.constant 2 : index
      %195 = memref.load %arg3[%c5_98, %c2_99] : memref<8x4xf32, #tpu.memory_space<smem>>
      %196 = vector.broadcast %195 : f32 to vector<8x128xf32>
      %197 = arith.mulf %19, %196 : vector<8x128xf32>
      %198 = arith.addf %194, %197 : vector<8x128xf32>
      %c5_100 = arith.constant 5 : index
      %c3_101 = arith.constant 3 : index
      %199 = memref.load %arg3[%c5_100, %c3_101] : memref<8x4xf32, #tpu.memory_space<smem>>
      %200 = vector.broadcast %199 : f32 to vector<8x128xf32>
      %201 = arith.mulf %21, %200 : vector<8x128xf32>
      %202 = arith.addf %198, %201 : vector<8x128xf32>
      %c5_102 = arith.constant 5 : index
      %203 = memref.load %arg4[%c5_102] : memref<8xf32, #tpu.memory_space<smem>>
      %204 = vector.broadcast %203 : f32 to vector<8x128xf32>
      %205 = arith.addf %202, %204 : vector<8x128xf32>
      %cst_103 = arith.constant 0.000000e+00 : f32
      %206 = vector.broadcast %cst_103 : f32 to vector<8x128xf32>
      %207 = arith.maximumf %205, %206 : vector<8x128xf32>
      %c0_104 = arith.constant 0 : index
      %c5_105 = arith.constant 5 : index
      %208 = memref.load %arg5[%c0_104, %c5_105] : memref<3x8xf32, #tpu.memory_space<smem>>
      %209 = vector.broadcast %208 : f32 to vector<8x128xf32>
      %210 = arith.mulf %207, %209 : vector<8x128xf32>
      %211 = arith.addf %179, %210 : vector<8x128xf32>
      %c1_106 = arith.constant 1 : index
      %c5_107 = arith.constant 5 : index
      %212 = memref.load %arg5[%c1_106, %c5_107] : memref<3x8xf32, #tpu.memory_space<smem>>
      %213 = vector.broadcast %212 : f32 to vector<8x128xf32>
      %214 = arith.mulf %207, %213 : vector<8x128xf32>
      %215 = arith.addf %183, %214 : vector<8x128xf32>
      %c2_108 = arith.constant 2 : index
      %c5_109 = arith.constant 5 : index
      %216 = memref.load %arg5[%c2_108, %c5_109] : memref<3x8xf32, #tpu.memory_space<smem>>
      %217 = vector.broadcast %216 : f32 to vector<8x128xf32>
      %218 = arith.mulf %207, %217 : vector<8x128xf32>
      %219 = arith.addf %187, %218 : vector<8x128xf32>
      %c6 = arith.constant 6 : index
      %c0_110 = arith.constant 0 : index
      %220 = memref.load %arg3[%c6, %c0_110] : memref<8x4xf32, #tpu.memory_space<smem>>
      %221 = vector.broadcast %220 : f32 to vector<8x128xf32>
      %222 = arith.mulf %15, %221 : vector<8x128xf32>
      %c6_111 = arith.constant 6 : index
      %c1_112 = arith.constant 1 : index
      %223 = memref.load %arg3[%c6_111, %c1_112] : memref<8x4xf32, #tpu.memory_space<smem>>
      %224 = vector.broadcast %223 : f32 to vector<8x128xf32>
      %225 = arith.mulf %17, %224 : vector<8x128xf32>
      %226 = arith.addf %222, %225 : vector<8x128xf32>
      %c6_113 = arith.constant 6 : index
      %c2_114 = arith.constant 2 : index
      %227 = memref.load %arg3[%c6_113, %c2_114] : memref<8x4xf32, #tpu.memory_space<smem>>
      %228 = vector.broadcast %227 : f32 to vector<8x128xf32>
      %229 = arith.mulf %19, %228 : vector<8x128xf32>
      %230 = arith.addf %226, %229 : vector<8x128xf32>
      %c6_115 = arith.constant 6 : index
      %c3_116 = arith.constant 3 : index
      %231 = memref.load %arg3[%c6_115, %c3_116] : memref<8x4xf32, #tpu.memory_space<smem>>
      %232 = vector.broadcast %231 : f32 to vector<8x128xf32>
      %233 = arith.mulf %21, %232 : vector<8x128xf32>
      %234 = arith.addf %230, %233 : vector<8x128xf32>
      %c6_117 = arith.constant 6 : index
      %235 = memref.load %arg4[%c6_117] : memref<8xf32, #tpu.memory_space<smem>>
      %236 = vector.broadcast %235 : f32 to vector<8x128xf32>
      %237 = arith.addf %234, %236 : vector<8x128xf32>
      %cst_118 = arith.constant 0.000000e+00 : f32
      %238 = vector.broadcast %cst_118 : f32 to vector<8x128xf32>
      %239 = arith.maximumf %237, %238 : vector<8x128xf32>
      %c0_119 = arith.constant 0 : index
      %c6_120 = arith.constant 6 : index
      %240 = memref.load %arg5[%c0_119, %c6_120] : memref<3x8xf32, #tpu.memory_space<smem>>
      %241 = vector.broadcast %240 : f32 to vector<8x128xf32>
      %242 = arith.mulf %239, %241 : vector<8x128xf32>
      %243 = arith.addf %211, %242 : vector<8x128xf32>
      %c1_121 = arith.constant 1 : index
      %c6_122 = arith.constant 6 : index
      %244 = memref.load %arg5[%c1_121, %c6_122] : memref<3x8xf32, #tpu.memory_space<smem>>
      %245 = vector.broadcast %244 : f32 to vector<8x128xf32>
      %246 = arith.mulf %239, %245 : vector<8x128xf32>
      %247 = arith.addf %215, %246 : vector<8x128xf32>
      %c2_123 = arith.constant 2 : index
      %c6_124 = arith.constant 6 : index
      %248 = memref.load %arg5[%c2_123, %c6_124] : memref<3x8xf32, #tpu.memory_space<smem>>
      %249 = vector.broadcast %248 : f32 to vector<8x128xf32>
      %250 = arith.mulf %239, %249 : vector<8x128xf32>
      %251 = arith.addf %219, %250 : vector<8x128xf32>
      %c7 = arith.constant 7 : index
      %c0_125 = arith.constant 0 : index
      %252 = memref.load %arg3[%c7, %c0_125] : memref<8x4xf32, #tpu.memory_space<smem>>
      %253 = vector.broadcast %252 : f32 to vector<8x128xf32>
      %254 = arith.mulf %15, %253 : vector<8x128xf32>
      %c7_126 = arith.constant 7 : index
      %c1_127 = arith.constant 1 : index
      %255 = memref.load %arg3[%c7_126, %c1_127] : memref<8x4xf32, #tpu.memory_space<smem>>
      %256 = vector.broadcast %255 : f32 to vector<8x128xf32>
      %257 = arith.mulf %17, %256 : vector<8x128xf32>
      %258 = arith.addf %254, %257 : vector<8x128xf32>
      %c7_128 = arith.constant 7 : index
      %c2_129 = arith.constant 2 : index
      %259 = memref.load %arg3[%c7_128, %c2_129] : memref<8x4xf32, #tpu.memory_space<smem>>
      %260 = vector.broadcast %259 : f32 to vector<8x128xf32>
      %261 = arith.mulf %19, %260 : vector<8x128xf32>
      %262 = arith.addf %258, %261 : vector<8x128xf32>
      %c7_130 = arith.constant 7 : index
      %c3_131 = arith.constant 3 : index
      %263 = memref.load %arg3[%c7_130, %c3_131] : memref<8x4xf32, #tpu.memory_space<smem>>
      %264 = vector.broadcast %263 : f32 to vector<8x128xf32>
      %265 = arith.mulf %21, %264 : vector<8x128xf32>
      %266 = arith.addf %262, %265 : vector<8x128xf32>
      %c7_132 = arith.constant 7 : index
      %267 = memref.load %arg4[%c7_132] : memref<8xf32, #tpu.memory_space<smem>>
      %268 = vector.broadcast %267 : f32 to vector<8x128xf32>
      %269 = arith.addf %266, %268 : vector<8x128xf32>
      %cst_133 = arith.constant 0.000000e+00 : f32
      %270 = vector.broadcast %cst_133 : f32 to vector<8x128xf32>
      %271 = arith.maximumf %269, %270 : vector<8x128xf32>
      %c0_134 = arith.constant 0 : index
      %c7_135 = arith.constant 7 : index
      %272 = memref.load %arg5[%c0_134, %c7_135] : memref<3x8xf32, #tpu.memory_space<smem>>
      %273 = vector.broadcast %272 : f32 to vector<8x128xf32>
      %274 = arith.mulf %271, %273 : vector<8x128xf32>
      %275 = arith.addf %243, %274 : vector<8x128xf32>
      %c1_136 = arith.constant 1 : index
      %c7_137 = arith.constant 7 : index
      %276 = memref.load %arg5[%c1_136, %c7_137] : memref<3x8xf32, #tpu.memory_space<smem>>
      %277 = vector.broadcast %276 : f32 to vector<8x128xf32>
      %278 = arith.mulf %271, %277 : vector<8x128xf32>
      %279 = arith.addf %247, %278 : vector<8x128xf32>
      %c2_138 = arith.constant 2 : index
      %c7_139 = arith.constant 7 : index
      %280 = memref.load %arg5[%c2_138, %c7_139] : memref<3x8xf32, #tpu.memory_space<smem>>
      %281 = vector.broadcast %280 : f32 to vector<8x128xf32>
      %282 = arith.mulf %271, %281 : vector<8x128xf32>
      %283 = arith.addf %251, %282 : vector<8x128xf32>
      %284 = tpu.iota {dimensions = array<i32: 0>} : vector<8x128xi32>
      %285 = tpu.iota {dimensions = array<i32: 1>} : vector<8x128xi32>
      %c8_i32 = arith.constant 8 : i32
      %286 = arith.muli %arg1, %c8_i32 : i32
      %c0_i32_140 = arith.constant 0 : i32
      %287 = arith.addi %286, %c0_i32_140 : i32
      %288 = vector.broadcast %287 : i32 to vector<8x128xi32>
      %289 = arith.addi %288, %284 : vector<8x128xi32>
      %c128_i32 = arith.constant 128 : i32
      %290 = vector.broadcast %c128_i32 : i32 to vector<8x128xi32>
      %291 = arith.muli %289, %290 : vector<8x128xi32>
      %292 = arith.addi %291, %285 : vector<8x128xi32>
      %c8_i32_141 = arith.constant 8 : i32
      %293 = vector.broadcast %c8_i32_141 : i32 to vector<8x128xi32>
      %294 = arith.cmpi slt, %292, %293 : vector<8x128xi32>
      %cst_142 = arith.constant -1.000000e+30 : f32
      %295 = vector.broadcast %cst_142 : f32 to vector<8x128xf32>
      %296 = arith.select %294, %275, %295 : vector<8x128xi1>, vector<8x128xf32>
      %cst_143 = arith.constant -1.000000e+30 : f32
      %297 = vector.broadcast %cst_143 : f32 to vector<8x128xf32>
      %298 = arith.select %294, %279, %297 : vector<8x128xi1>, vector<8x128xf32>
      %cst_144 = arith.constant -1.000000e+30 : f32
      %299 = vector.broadcast %cst_144 : f32 to vector<8x128xf32>
      %300 = arith.select %294, %283, %299 : vector<8x128xi1>, vector<8x128xf32>
      %c0_145 = arith.constant 0 : index
      %c0_146 = arith.constant 0 : index
      %c0_147 = arith.constant 0 : index
      %301 = vector.load %arg8[%c0_145, %c0_146, %c0_147] : memref<3x8x128xf32, #tpu.memory_space<vmem>>, vector<1x8x128xf32>
      %302 = vector.shape_cast %301 : vector<1x8x128xf32> to vector<8x128xf32>
      %303 = arith.maximumf %302, %296 : vector<8x128xf32>
      %c0_148 = arith.constant 0 : index
      %c0_149 = arith.constant 0 : index
      %c0_150 = arith.constant 0 : index
      %304 = vector.load %arg9[%c0_148, %c0_149, %c0_150] : memref<3x8x128xf32, #tpu.memory_space<vmem>>, vector<1x8x128xf32>
      %305 = vector.shape_cast %304 : vector<1x8x128xf32> to vector<8x128xf32>
      %306 = arith.subf %302, %303 : vector<8x128xf32>
      %307 = math.exp %306 : vector<8x128xf32>
      %308 = arith.mulf %305, %307 : vector<8x128xf32>
      %309 = arith.subf %296, %303 : vector<8x128xf32>
      %310 = math.exp %309 : vector<8x128xf32>
      %311 = arith.addf %308, %310 : vector<8x128xf32>
      %c0_151 = arith.constant 0 : index
      %c0_152 = arith.constant 0 : index
      %c0_153 = arith.constant 0 : index
      %312 = vector.load %arg9[%c0_151, %c0_152, %c0_153] : memref<3x8x128xf32, #tpu.memory_space<vmem>>, vector<1x8x128xf32>
      %313 = vector.shape_cast %312 : vector<1x8x128xf32> to vector<8x128xf32>
      %314 = vector.shape_cast %311 : vector<8x128xf32> to vector<1x8x128xf32>
      tpu.vector_store %arg9[%c0_151, %c0_152, %c0_153], %314 {strides = array<i32>} : memref<3x8x128xf32, #tpu.memory_space<vmem>>, vector<1x8x128xf32>,
      %c0_154 = arith.constant 0 : index
      %c0_155 = arith.constant 0 : index
      %c0_156 = arith.constant 0 : index
      %315 = vector.load %arg8[%c0_154, %c0_155, %c0_156] : memref<3x8x128xf32, #tpu.memory_space<vmem>>, vector<1x8x128xf32>
      %316 = vector.shape_cast %315 : vector<1x8x128xf32> to vector<8x128xf32>
      %317 = vector.shape_cast %303 : vector<8x128xf32> to vector<1x8x128xf32>
      tpu.vector_store %arg8[%c0_154, %c0_155, %c0_156], %317 {strides = array<i32>} : memref<3x8x128xf32, #tpu.memory_space<vmem>>, vector<1x8x128xf32>,
      %c1_157 = arith.constant 1 : index
      %c0_158 = arith.constant 0 : index
      %c0_159 = arith.constant 0 : index
      %318 = vector.load %arg8[%c1_157, %c0_158, %c0_159] : memref<3x8x128xf32, #tpu.memory_space<vmem>>, vector<1x8x128xf32>
      %319 = vector.shape_cast %318 : vector<1x8x128xf32> to vector<8x128xf32>
      %320 = arith.maximumf %319, %298 : vector<8x128xf32>
      %c1_160 = arith.constant 1 : index
      %c0_161 = arith.constant 0 : index
      %c0_162 = arith.constant 0 : index
      %321 = vector.load %arg9[%c1_160, %c0_161, %c0_162] : memref<3x8x128xf32, #tpu.memory_space<vmem>>, vector<1x8x128xf32>
      %322 = vector.shape_cast %321 : vector<1x8x128xf32> to vector<8x128xf32>
      %323 = arith.subf %319, %320 : vector<8x128xf32>
      %324 = math.exp %323 : vector<8x128xf32>
      %325 = arith.mulf %322, %324 : vector<8x128xf32>
      %326 = arith.subf %298, %320 : vector<8x128xf32>
      %327 = math.exp %326 : vector<8x128xf32>
      %328 = arith.addf %325, %327 : vector<8x128xf32>
      %c1_163 = arith.constant 1 : index
      %c0_164 = arith.constant 0 : index
      %c0_165 = arith.constant 0 : index
      %329 = vector.load %arg9[%c1_163, %c0_164, %c0_165] : memref<3x8x128xf32, #tpu.memory_space<vmem>>, vector<1x8x128xf32>
      %330 = vector.shape_cast %329 : vector<1x8x128xf32> to vector<8x128xf32>
      %331 = vector.shape_cast %328 : vector<8x128xf32> to vector<1x8x128xf32>
      tpu.vector_store %arg9[%c1_163, %c0_164, %c0_165], %331 {strides = array<i32>} : memref<3x8x128xf32, #tpu.memory_space<vmem>>, vector<1x8x128xf32>,
      %c1_166 = arith.constant 1 : index
      %c0_167 = arith.constant 0 : index
      %c0_168 = arith.constant 0 : index
      %332 = vector.load %arg8[%c1_166, %c0_167, %c0_168] : memref<3x8x128xf32, #tpu.memory_space<vmem>>, vector<1x8x128xf32>
      %333 = vector.shape_cast %332 : vector<1x8x128xf32> to vector<8x128xf32>
      %334 = vector.shape_cast %320 : vector<8x128xf32> to vector<1x8x128xf32>
      tpu.vector_store %arg8[%c1_166, %c0_167, %c0_168], %334 {strides = array<i32>} : memref<3x8x128xf32, #tpu.memory_space<vmem>>, vector<1x8x128xf32>,
      %c2_169 = arith.constant 2 : index
      %c0_170 = arith.constant 0 : index
      %c0_171 = arith.constant 0 : index
      %335 = vector.load %arg8[%c2_169, %c0_170, %c0_171] : memref<3x8x128xf32, #tpu.memory_space<vmem>>, vector<1x8x128xf32>
      %336 = vector.shape_cast %335 : vector<1x8x128xf32> to vector<8x128xf32>
      %337 = arith.maximumf %336, %300 : vector<8x128xf32>
      %c2_172 = arith.constant 2 : index
      %c0_173 = arith.constant 0 : index
      %c0_174 = arith.constant 0 : index
      %338 = vector.load %arg9[%c2_172, %c0_173, %c0_174] : memref<3x8x128xf32, #tpu.memory_space<vmem>>, vector<1x8x128xf32>
      %339 = vector.shape_cast %338 : vector<1x8x128xf32> to vector<8x128xf32>
      %340 = arith.subf %336, %337 : vector<8x128xf32>
      %341 = math.exp %340 : vector<8x128xf32>
      %342 = arith.mulf %339, %341 : vector<8x128xf32>
      %343 = arith.subf %300, %337 : vector<8x128xf32>
      %344 = math.exp %343 : vector<8x128xf32>
      %345 = arith.addf %342, %344 : vector<8x128xf32>
      %c2_175 = arith.constant 2 : index
      %c0_176 = arith.constant 0 : index
      %c0_177 = arith.constant 0 : index
      %346 = vector.load %arg9[%c2_175, %c0_176, %c0_177] : memref<3x8x128xf32, #tpu.memory_space<vmem>>, vector<1x8x128xf32>
      %347 = vector.shape_cast %346 : vector<1x8x128xf32> to vector<8x128xf32>
      %348 = vector.shape_cast %345 : vector<8x128xf32> to vector<1x8x128xf32>
      tpu.vector_store %arg9[%c2_175, %c0_176, %c0_177], %348 {strides = array<i32>} : memref<3x8x128xf32, #tpu.memory_space<vmem>>, vector<1x8x128xf32>,
      %c2_178 = arith.constant 2 : index
      %c0_179 = arith.constant 0 : index
      %c0_180 = arith.constant 0 : index
      %349 = vector.load %arg8[%c2_178, %c0_179, %c0_180] : memref<3x8x128xf32, #tpu.memory_space<vmem>>, vector<1x8x128xf32>
      %350 = vector.shape_cast %349 : vector<1x8x128xf32> to vector<8x128xf32>
      %351 = vector.shape_cast %337 : vector<8x128xf32> to vector<1x8x128xf32>
      tpu.vector_store %arg8[%c2_178, %c0_179, %c0_180], %351 {strides = array<i32>} : memref<3x8x128xf32, #tpu.memory_space<vmem>>, vector<1x8x128xf32>,
      %c0_181 = arith.constant 0 : index
      %c0_182 = arith.constant 0 : index
      %c0_183 = arith.constant 0 : index
      %352 = vector.load %arg8[%c0_181, %c0_182, %c0_183] : memref<3x8x128xf32, #tpu.memory_space<vmem>>, vector<1x8x128xf32>
      %353 = vector.shape_cast %352 : vector<1x8x128xf32> to vector<8x128xf32>
      %c0_184 = arith.constant 0 : index
      %c0_185 = arith.constant 0 : index
      %c0_186 = arith.constant 0 : index
      %354 = vector.load %arg9[%c0_184, %c0_185, %c0_186] : memref<3x8x128xf32, #tpu.memory_space<vmem>>, vector<1x8x128xf32>
      %355 = vector.shape_cast %354 : vector<1x8x128xf32> to vector<8x128xf32>
      %cst_187 = arith.constant dense<0xFF800000> : vector<128xf32>
      %356 = vector.multi_reduction <maximumf>, %353, %cst_187 [0] : vector<8x128xf32> to vector<128xf32>
      %357 = vector.shape_cast %356 : vector<128xf32> to vector<1x128xf32>
      %358 = vector.broadcast %357 : vector<1x128xf32> to vector<8x128xf32>
      %359 = arith.subf %353, %358 : vector<8x128xf32>
      %360 = math.exp %359 : vector<8x128xf32>
      %361 = arith.mulf %355, %360 : vector<8x128xf32>
      %cst_188 = arith.constant dense<0.000000e+00> : vector<128xf32>
      %362 = vector.multi_reduction <add>, %361, %cst_188 [0] : vector<8x128xf32> to vector<128xf32>
      %363 = vector.shape_cast %362 : vector<128xf32> to vector<1x128xf32>
      %cst_189 = arith.constant dense<0xFF800000> : vector<1xf32>
      %364 = vector.multi_reduction <maximumf>, %357, %cst_189 [1] : vector<1x128xf32> to vector<1xf32>
      %365 = vector.shape_cast %364 : vector<1xf32> to vector<1x1xf32>
      %366 = vector.broadcast %365 : vector<1x1xf32> to vector<1x128xf32>
      %367 = arith.subf %357, %366 : vector<1x128xf32>
      %368 = math.exp %367 : vector<1x128xf32>
      %369 = arith.mulf %363, %368 : vector<1x128xf32>
      %cst_190 = arith.constant dense<0.000000e+00> : vector<1xf32>
      %370 = vector.multi_reduction <add>, %369, %cst_190 [1] : vector<1x128xf32> to vector<1xf32>
      %371 = vector.shape_cast %370 : vector<1xf32> to vector<1x1xf32>
      %372 = math.log %371 : vector<1x1xf32>
      %373 = arith.addf %365, %372 : vector<1x1xf32>
      %374 = vector.shape_cast %373 : vector<1x1xf32> to vector<1x1xf32>
      %375 = vector.broadcast %374 : vector<1x1xf32> to vector<1x128xf32>
      %c0_191 = arith.constant 0 : index
      %c0_192 = arith.constant 0 : index
      %c0_193 = arith.constant 0 : index
      %376 = vector.load %arg10[%c0_191, %c0_192, %c0_193] : memref<3x1x128xf32, #tpu.memory_space<vmem>>, vector<1x1x128xf32>
      %377 = vector.shape_cast %376 : vector<1x1x128xf32> to vector<1x128xf32>
      %378 = vector.shape_cast %375 : vector<1x128xf32> to vector<1x1x128xf32>
      tpu.vector_store %arg10[%c0_191, %c0_192, %c0_193], %378 {strides = array<i32>} : memref<3x1x128xf32, #tpu.memory_space<vmem>>, vector<1x1x128xf32>,
      %c1_194 = arith.constant 1 : index
      %c0_195 = arith.constant 0 : index
      %c0_196 = arith.constant 0 : index
      %379 = vector.load %arg8[%c1_194, %c0_195, %c0_196] : memref<3x8x128xf32, #tpu.memory_space<vmem>>, vector<1x8x128xf32>
      %380 = vector.shape_cast %379 : vector<1x8x128xf32> to vector<8x128xf32>
      %c1_197 = arith.constant 1 : index
      %c0_198 = arith.constant 0 : index
      %c0_199 = arith.constant 0 : index
      %381 = vector.load %arg9[%c1_197, %c0_198, %c0_199] : memref<3x8x128xf32, #tpu.memory_space<vmem>>, vector<1x8x128xf32>
      %382 = vector.shape_cast %381 : vector<1x8x128xf32> to vector<8x128xf32>
      %cst_200 = arith.constant dense<0xFF800000> : vector<128xf32>
      %383 = vector.multi_reduction <maximumf>, %380, %cst_200 [0] : vector<8x128xf32> to vector<128xf32>
      %384 = vector.shape_cast %383 : vector<128xf32> to vector<1x128xf32>
      %385 = vector.broadcast %384 : vector<1x128xf32> to vector<8x128xf32>
      %386 = arith.subf %380, %385 : vector<8x128xf32>
      %387 = math.exp %386 : vector<8x128xf32>
      %388 = arith.mulf %382, %387 : vector<8x128xf32>
      %cst_201 = arith.constant dense<0.000000e+00> : vector<128xf32>
      %389 = vector.multi_reduction <add>, %388, %cst_201 [0] : vector<8x128xf32> to vector<128xf32>
      %390 = vector.shape_cast %389 : vector<128xf32> to vector<1x128xf32>
      %cst_202 = arith.constant dense<0xFF800000> : vector<1xf32>
      %391 = vector.multi_reduction <maximumf>, %384, %cst_202 [1] : vector<1x128xf32> to vector<1xf32>
      %392 = vector.shape_cast %391 : vector<1xf32> to vector<1x1xf32>
      %393 = vector.broadcast %392 : vector<1x1xf32> to vector<1x128xf32>
      %394 = arith.subf %384, %393 : vector<1x128xf32>
      %395 = math.exp %394 : vector<1x128xf32>
      %396 = arith.mulf %390, %395 : vector<1x128xf32>
      %cst_203 = arith.constant dense<0.000000e+00> : vector<1xf32>
      %397 = vector.multi_reduction <add>, %396, %cst_203 [1] : vector<1x128xf32> to vector<1xf32>
      %398 = vector.shape_cast %397 : vector<1xf32> to vector<1x1xf32>
      %399 = math.log %398 : vector<1x1xf32>
      %400 = arith.addf %392, %399 : vector<1x1xf32>
      %401 = vector.shape_cast %400 : vector<1x1xf32> to vector<1x1xf32>
      %402 = vector.broadcast %401 : vector<1x1xf32> to vector<1x128xf32>
      %c1_204 = arith.constant 1 : index
      %c0_205 = arith.constant 0 : index
      %c0_206 = arith.constant 0 : index
      %403 = vector.load %arg10[%c1_204, %c0_205, %c0_206] : memref<3x1x128xf32, #tpu.memory_space<vmem>>, vector<1x1x128xf32>
      %404 = vector.shape_cast %403 : vector<1x1x128xf32> to vector<1x128xf32>
      %405 = vector.shape_cast %402 : vector<1x128xf32> to vector<1x1x128xf32>
      tpu.vector_store %arg10[%c1_204, %c0_205, %c0_206], %405 {strides = array<i32>} : memref<3x1x128xf32, #tpu.memory_space<vmem>>, vector<1x1x128xf32>,
      %c2_207 = arith.constant 2 : index
      %c0_208 = arith.constant 0 : index
      %c0_209 = arith.constant 0 : index
      %406 = vector.load %arg8[%c2_207, %c0_208, %c0_209] : memref<3x8x128xf32, #tpu.memory_space<vmem>>, vector<1x8x128xf32>
      %407 = vector.shape_cast %406 : vector<1x8x128xf32> to vector<8x128xf32>
      %c2_210 = arith.constant 2 : index
      %c0_211 = arith.constant 0 : index
      %c0_212 = arith.constant 0 : index
      %408 = vector.load %arg9[%c2_210, %c0_211, %c0_212] : memref<3x8x128xf32, #tpu.memory_space<vmem>>, vector<1x8x128xf32>
      %409 = vector.shape_cast %408 : vector<1x8x128xf32> to vector<8x128xf32>
      %cst_213 = arith.constant dense<0xFF800000> : vector<128xf32>
      %410 = vector.multi_reduction <maximumf>, %407, %cst_213 [0] : vector<8x128xf32> to vector<128xf32>
      %411 = vector.shape_cast %410 : vector<128xf32> to vector<1x128xf32>
      %412 = vector.broadcast %411 : vector<1x128xf32> to vector<8x128xf32>
      %413 = arith.subf %407, %412 : vector<8x128xf32>
      %414 = math.exp %413 : vector<8x128xf32>
      %415 = arith.mulf %409, %414 : vector<8x128xf32>
      %cst_214 = arith.constant dense<0.000000e+00> : vector<128xf32>
      %416 = vector.multi_reduction <add>, %415, %cst_214 [0] : vector<8x128xf32> to vector<128xf32>
      %417 = vector.shape_cast %416 : vector<128xf32> to vector<1x128xf32>
      %cst_215 = arith.constant dense<0xFF800000> : vector<1xf32>
      %418 = vector.multi_reduction <maximumf>, %411, %cst_215 [1] : vector<1x128xf32> to vector<1xf32>
      %419 = vector.shape_cast %418 : vector<1xf32> to vector<1x1xf32>
      %420 = vector.broadcast %419 : vector<1x1xf32> to vector<1x128xf32>
      %421 = arith.subf %411, %420 : vector<1x128xf32>
      %422 = math.exp %421 : vector<1x128xf32>
      %423 = arith.mulf %417, %422 : vector<1x128xf32>
      %cst_216 = arith.constant dense<0.000000e+00> : vector<1xf32>
      %424 = vector.multi_reduction <add>, %423, %cst_216 [1] : vector<1x128xf32> to vector<1xf32>
      %425 = vector.shape_cast %424 : vector<1xf32> to vector<1x1xf32>
      %426 = math.log %425 : vector<1x1xf32>
      %427 = arith.addf %419, %426 : vector<1x1xf32>
      %428 = vector.shape_cast %427 : vector<1x1xf32> to vector<1x1xf32>
      %429 = vector.broadcast %428 : vector<1x1xf32> to vector<1x128xf32>
      %c2_217 = arith.constant 2 : index
      %c0_218 = arith.constant 0 : index
      %c0_219 = arith.constant 0 : index
      %430 = vector.load %arg10[%c2_217, %c0_218, %c0_219] : memref<3x1x128xf32, #tpu.memory_space<vmem>>, vector<1x1x128xf32>
      %431 = vector.shape_cast %430 : vector<1x1x128xf32> to vector<1x128xf32>
      %432 = vector.shape_cast %429 : vector<1x128xf32> to vector<1x1x128xf32>
      tpu.vector_store %arg10[%c2_217, %c0_218, %c0_219], %432 {strides = array<i32>} : memref<3x1x128xf32, #tpu.memory_space<vmem>>, vector<1x1x128xf32>,
    } else {
    }
    %c1_i32 = arith.constant 1 : i32
    %10 = arith.cmpi eq, %arg0, %c1_i32 : i32
    %11 = arith.andi %10, %0 : i1
    %12 = arith.extui %11 : i1 to i32
    %c0_i32_5 = arith.constant 0 : i32
    %13 = arith.cmpi ne, %12, %c0_i32_5 : i32
    scf.if %13 {
      %c0 = arith.constant 0 : index
      %c0_6 = arith.constant 0 : index
      %c0_7 = arith.constant 0 : index
      %14 = vector.load %arg2[%c0, %c0_6, %c0_7] : memref<4x8x128xf32, #tpu.memory_space<vmem>>, vector<1x8x128xf32>
      %15 = vector.shape_cast %14 : vector<1x8x128xf32> to vector<8x128xf32>
      %c1 = arith.constant 1 : index
      %c0_8 = arith.constant 0 : index
      %c0_9 = arith.constant 0 : index
      %16 = vector.load %arg2[%c1, %c0_8, %c0_9] : memref<4x8x128xf32, #tpu.memory_space<vmem>>, vector<1x8x128xf32>
      %17 = vector.shape_cast %16 : vector<1x8x128xf32> to vector<8x128xf32>
      %c2 = arith.constant 2 : index
      %c0_10 = arith.constant 0 : index
      %c0_11 = arith.constant 0 : index
      %18 = vector.load %arg2[%c2, %c0_10, %c0_11] : memref<4x8x128xf32, #tpu.memory_space<vmem>>, vector<1x8x128xf32>
      %19 = vector.shape_cast %18 : vector<1x8x128xf32> to vector<8x128xf32>
      %c3 = arith.constant 3 : index
      %c0_12 = arith.constant 0 : index
      %c0_13 = arith.constant 0 : index
      %20 = vector.load %arg2[%c3, %c0_12, %c0_13] : memref<4x8x128xf32, #tpu.memory_space<vmem>>, vector<1x8x128xf32>
      %21 = vector.shape_cast %20 : vector<1x8x128xf32> to vector<8x128xf32>
      %c0_14 = arith.constant 0 : index
      %c0_15 = arith.constant 0 : index
      %22 = memref.load %arg3[%c0_14, %c0_15] : memref<8x4xf32, #tpu.memory_space<smem>>
      %23 = vector.broadcast %22 : f32 to vector<8x128xf32>
      %24 = arith.mulf %15, %23 : vector<8x128xf32>
      %c0_16 = arith.constant 0 : index
      %c1_17 = arith.constant 1 : index
      %25 = memref.load %arg3[%c0_16, %c1_17] : memref<8x4xf32, #tpu.memory_space<smem>>
      %26 = vector.broadcast %25 : f32 to vector<8x128xf32>
      %27 = arith.mulf %17, %26 : vector<8x128xf32>
      %28 = arith.addf %24, %27 : vector<8x128xf32>
      %c0_18 = arith.constant 0 : index
      %c2_19 = arith.constant 2 : index
      %29 = memref.load %arg3[%c0_18, %c2_19] : memref<8x4xf32, #tpu.memory_space<smem>>
      %30 = vector.broadcast %29 : f32 to vector<8x128xf32>
      %31 = arith.mulf %19, %30 : vector<8x128xf32>
      %32 = arith.addf %28, %31 : vector<8x128xf32>
      %c0_20 = arith.constant 0 : index
      %c3_21 = arith.constant 3 : index
      %33 = memref.load %arg3[%c0_20, %c3_21] : memref<8x4xf32, #tpu.memory_space<smem>>
      %34 = vector.broadcast %33 : f32 to vector<8x128xf32>
      %35 = arith.mulf %21, %34 : vector<8x128xf32>
      %36 = arith.addf %32, %35 : vector<8x128xf32>
      %c0_22 = arith.constant 0 : index
      %37 = memref.load %arg4[%c0_22] : memref<8xf32, #tpu.memory_space<smem>>
      %38 = vector.broadcast %37 : f32 to vector<8x128xf32>
      %39 = arith.addf %36, %38 : vector<8x128xf32>
      %cst = arith.constant 0.000000e+00 : f32
      %40 = vector.broadcast %cst : f32 to vector<8x128xf32>
      %41 = arith.maximumf %39, %40 : vector<8x128xf32>
      %c0_23 = arith.constant 0 : index
      %c0_24 = arith.constant 0 : index
      %42 = memref.load %arg5[%c0_23, %c0_24] : memref<3x8xf32, #tpu.memory_space<smem>>
      %43 = vector.broadcast %42 : f32 to vector<8x128xf32>
      %44 = arith.mulf %41, %43 : vector<8x128xf32>
      %c0_25 = arith.constant 0 : index
      %45 = memref.load %arg6[%c0_25] : memref<3xf32, #tpu.memory_space<smem>>
      %46 = vector.broadcast %45 : f32 to vector<8x128xf32>
      %47 = arith.addf %44, %46 : vector<8x128xf32>
      %c1_26 = arith.constant 1 : index
      %c0_27 = arith.constant 0 : index
      %48 = memref.load %arg5[%c1_26, %c0_27] : memref<3x8xf32, #tpu.memory_space<smem>>
      %49 = vector.broadcast %48 : f32 to vector<8x128xf32>
      %50 = arith.mulf %41, %49 : vector<8x128xf32>
      %c1_28 = arith.constant 1 : index
      %51 = memref.load %arg6[%c1_28] : memref<3xf32, #tpu.memory_space<smem>>
      %52 = vector.broadcast %51 : f32 to vector<8x128xf32>
      %53 = arith.addf %50, %52 : vector<8x128xf32>
      %c2_29 = arith.constant 2 : index
      %c0_30 = arith.constant 0 : index
      %54 = memref.load %arg5[%c2_29, %c0_30] : memref<3x8xf32, #tpu.memory_space<smem>>
      %55 = vector.broadcast %54 : f32 to vector<8x128xf32>
      %56 = arith.mulf %41, %55 : vector<8x128xf32>
      %c2_31 = arith.constant 2 : index
      %57 = memref.load %arg6[%c2_31] : memref<3xf32, #tpu.memory_space<smem>>
      %58 = vector.broadcast %57 : f32 to vector<8x128xf32>
      %59 = arith.addf %56, %58 : vector<8x128xf32>
      %c1_32 = arith.constant 1 : index
      %c0_33 = arith.constant 0 : index
      %60 = memref.load %arg3[%c1_32, %c0_33] : memref<8x4xf32, #tpu.memory_space<smem>>
      %61 = vector.broadcast %60 : f32 to vector<8x128xf32>
      %62 = arith.mulf %15, %61 : vector<8x128xf32>
      %c1_34 = arith.constant 1 : index
      %c1_35 = arith.constant 1 : index
      %63 = memref.load %arg3[%c1_34, %c1_35] : memref<8x4xf32, #tpu.memory_space<smem>>
      %64 = vector.broadcast %63 : f32 to vector<8x128xf32>
      %65 = arith.mulf %17, %64 : vector<8x128xf32>
      %66 = arith.addf %62, %65 : vector<8x128xf32>
      %c1_36 = arith.constant 1 : index
      %c2_37 = arith.constant 2 : index
      %67 = memref.load %arg3[%c1_36, %c2_37] : memref<8x4xf32, #tpu.memory_space<smem>>
      %68 = vector.broadcast %67 : f32 to vector<8x128xf32>
      %69 = arith.mulf %19, %68 : vector<8x128xf32>
      %70 = arith.addf %66, %69 : vector<8x128xf32>
      %c1_38 = arith.constant 1 : index
      %c3_39 = arith.constant 3 : index
      %71 = memref.load %arg3[%c1_38, %c3_39] : memref<8x4xf32, #tpu.memory_space<smem>>
      %72 = vector.broadcast %71 : f32 to vector<8x128xf32>
      %73 = arith.mulf %21, %72 : vector<8x128xf32>
      %74 = arith.addf %70, %73 : vector<8x128xf32>
      %c1_40 = arith.constant 1 : index
      %75 = memref.load %arg4[%c1_40] : memref<8xf32, #tpu.memory_space<smem>>
      %76 = vector.broadcast %75 : f32 to vector<8x128xf32>
      %77 = arith.addf %74, %76 : vector<8x128xf32>
      %cst_41 = arith.constant 0.000000e+00 : f32
      %78 = vector.broadcast %cst_41 : f32 to vector<8x128xf32>
      %79 = arith.maximumf %77, %78 : vector<8x128xf32>
      %c0_42 = arith.constant 0 : index
      %c1_43 = arith.constant 1 : index
      %80 = memref.load %arg5[%c0_42, %c1_43] : memref<3x8xf32, #tpu.memory_space<smem>>
      %81 = vector.broadcast %80 : f32 to vector<8x128xf32>
      %82 = arith.mulf %79, %81 : vector<8x128xf32>
      %83 = arith.addf %47, %82 : vector<8x128xf32>
      %c1_44 = arith.constant 1 : index
      %c1_45 = arith.constant 1 : index
      %84 = memref.load %arg5[%c1_44, %c1_45] : memref<3x8xf32, #tpu.memory_space<smem>>
      %85 = vector.broadcast %84 : f32 to vector<8x128xf32>
      %86 = arith.mulf %79, %85 : vector<8x128xf32>
      %87 = arith.addf %53, %86 : vector<8x128xf32>
      %c2_46 = arith.constant 2 : index
      %c1_47 = arith.constant 1 : index
      %88 = memref.load %arg5[%c2_46, %c1_47] : memref<3x8xf32, #tpu.memory_space<smem>>
      %89 = vector.broadcast %88 : f32 to vector<8x128xf32>
      %90 = arith.mulf %79, %89 : vector<8x128xf32>
      %91 = arith.addf %59, %90 : vector<8x128xf32>
      %c2_48 = arith.constant 2 : index
      %c0_49 = arith.constant 0 : index
      %92 = memref.load %arg3[%c2_48, %c0_49] : memref<8x4xf32, #tpu.memory_space<smem>>
      %93 = vector.broadcast %92 : f32 to vector<8x128xf32>
      %94 = arith.mulf %15, %93 : vector<8x128xf32>
      %c2_50 = arith.constant 2 : index
      %c1_51 = arith.constant 1 : index
      %95 = memref.load %arg3[%c2_50, %c1_51] : memref<8x4xf32, #tpu.memory_space<smem>>
      %96 = vector.broadcast %95 : f32 to vector<8x128xf32>
      %97 = arith.mulf %17, %96 : vector<8x128xf32>
      %98 = arith.addf %94, %97 : vector<8x128xf32>
      %c2_52 = arith.constant 2 : index
      %c2_53 = arith.constant 2 : index
      %99 = memref.load %arg3[%c2_52, %c2_53] : memref<8x4xf32, #tpu.memory_space<smem>>
      %100 = vector.broadcast %99 : f32 to vector<8x128xf32>
      %101 = arith.mulf %19, %100 : vector<8x128xf32>
      %102 = arith.addf %98, %101 : vector<8x128xf32>
      %c2_54 = arith.constant 2 : index
      %c3_55 = arith.constant 3 : index
      %103 = memref.load %arg3[%c2_54, %c3_55] : memref<8x4xf32, #tpu.memory_space<smem>>
      %104 = vector.broadcast %103 : f32 to vector<8x128xf32>
      %105 = arith.mulf %21, %104 : vector<8x128xf32>
      %106 = arith.addf %102, %105 : vector<8x128xf32>
      %c2_56 = arith.constant 2 : index
      %107 = memref.load %arg4[%c2_56] : memref<8xf32, #tpu.memory_space<smem>>
      %108 = vector.broadcast %107 : f32 to vector<8x128xf32>
      %109 = arith.addf %106, %108 : vector<8x128xf32>
      %cst_57 = arith.constant 0.000000e+00 : f32
      %110 = vector.broadcast %cst_57 : f32 to vector<8x128xf32>
      %111 = arith.maximumf %109, %110 : vector<8x128xf32>
      %c0_58 = arith.constant 0 : index
      %c2_59 = arith.constant 2 : index
      %112 = memref.load %arg5[%c0_58, %c2_59] : memref<3x8xf32, #tpu.memory_space<smem>>
      %113 = vector.broadcast %112 : f32 to vector<8x128xf32>
      %114 = arith.mulf %111, %113 : vector<8x128xf32>
      %115 = arith.addf %83, %114 : vector<8x128xf32>
      %c1_60 = arith.constant 1 : index
      %c2_61 = arith.constant 2 : index
      %116 = memref.load %arg5[%c1_60, %c2_61] : memref<3x8xf32, #tpu.memory_space<smem>>
      %117 = vector.broadcast %116 : f32 to vector<8x128xf32>
      %118 = arith.mulf %111, %117 : vector<8x128xf32>
      %119 = arith.addf %87, %118 : vector<8x128xf32>
      %c2_62 = arith.constant 2 : index
      %c2_63 = arith.constant 2 : index
      %120 = memref.load %arg5[%c2_62, %c2_63] : memref<3x8xf32, #tpu.memory_space<smem>>
      %121 = vector.broadcast %120 : f32 to vector<8x128xf32>
      %122 = arith.mulf %111, %121 : vector<8x128xf32>
      %123 = arith.addf %91, %122 : vector<8x128xf32>
      %c3_64 = arith.constant 3 : index
      %c0_65 = arith.constant 0 : index
      %124 = memref.load %arg3[%c3_64, %c0_65] : memref<8x4xf32, #tpu.memory_space<smem>>
      %125 = vector.broadcast %124 : f32 to vector<8x128xf32>
      %126 = arith.mulf %15, %125 : vector<8x128xf32>
      %c3_66 = arith.constant 3 : index
      %c1_67 = arith.constant 1 : index
      %127 = memref.load %arg3[%c3_66, %c1_67] : memref<8x4xf32, #tpu.memory_space<smem>>
      %128 = vector.broadcast %127 : f32 to vector<8x128xf32>
      %129 = arith.mulf %17, %128 : vector<8x128xf32>
      %130 = arith.addf %126, %129 : vector<8x128xf32>
      %c3_68 = arith.constant 3 : index
      %c2_69 = arith.constant 2 : index
      %131 = memref.load %arg3[%c3_68, %c2_69] : memref<8x4xf32, #tpu.memory_space<smem>>
      %132 = vector.broadcast %131 : f32 to vector<8x128xf32>
      %133 = arith.mulf %19, %132 : vector<8x128xf32>
      %134 = arith.addf %130, %133 : vector<8x128xf32>
      %c3_70 = arith.constant 3 : index
      %c3_71 = arith.constant 3 : index
      %135 = memref.load %arg3[%c3_70, %c3_71] : memref<8x4xf32, #tpu.memory_space<smem>>
      %136 = vector.broadcast %135 : f32 to vector<8x128xf32>
      %137 = arith.mulf %21, %136 : vector<8x128xf32>
      %138 = arith.addf %134, %137 : vector<8x128xf32>
      %c3_72 = arith.constant 3 : index
      %139 = memref.load %arg4[%c3_72] : memref<8xf32, #tpu.memory_space<smem>>
      %140 = vector.broadcast %139 : f32 to vector<8x128xf32>
      %141 = arith.addf %138, %140 : vector<8x128xf32>
      %cst_73 = arith.constant 0.000000e+00 : f32
      %142 = vector.broadcast %cst_73 : f32 to vector<8x128xf32>
      %143 = arith.maximumf %141, %142 : vector<8x128xf32>
      %c0_74 = arith.constant 0 : index
      %c3_75 = arith.constant 3 : index
      %144 = memref.load %arg5[%c0_74, %c3_75] : memref<3x8xf32, #tpu.memory_space<smem>>
      %145 = vector.broadcast %144 : f32 to vector<8x128xf32>
      %146 = arith.mulf %143, %145 : vector<8x128xf32>
      %147 = arith.addf %115, %146 : vector<8x128xf32>
      %c1_76 = arith.constant 1 : index
      %c3_77 = arith.constant 3 : index
      %148 = memref.load %arg5[%c1_76, %c3_77] : memref<3x8xf32, #tpu.memory_space<smem>>
      %149 = vector.broadcast %148 : f32 to vector<8x128xf32>
      %150 = arith.mulf %143, %149 : vector<8x128xf32>
      %151 = arith.addf %119, %150 : vector<8x128xf32>
      %c2_78 = arith.constant 2 : index
      %c3_79 = arith.constant 3 : index
      %152 = memref.load %arg5[%c2_78, %c3_79] : memref<3x8xf32, #tpu.memory_space<smem>>
      %153 = vector.broadcast %152 : f32 to vector<8x128xf32>
      %154 = arith.mulf %143, %153 : vector<8x128xf32>
      %155 = arith.addf %123, %154 : vector<8x128xf32>
      %c4 = arith.constant 4 : index
      %c0_80 = arith.constant 0 : index
      %156 = memref.load %arg3[%c4, %c0_80] : memref<8x4xf32, #tpu.memory_space<smem>>
      %157 = vector.broadcast %156 : f32 to vector<8x128xf32>
      %158 = arith.mulf %15, %157 : vector<8x128xf32>
      %c4_81 = arith.constant 4 : index
      %c1_82 = arith.constant 1 : index
      %159 = memref.load %arg3[%c4_81, %c1_82] : memref<8x4xf32, #tpu.memory_space<smem>>
      %160 = vector.broadcast %159 : f32 to vector<8x128xf32>
      %161 = arith.mulf %17, %160 : vector<8x128xf32>
      %162 = arith.addf %158, %161 : vector<8x128xf32>
      %c4_83 = arith.constant 4 : index
      %c2_84 = arith.constant 2 : index
      %163 = memref.load %arg3[%c4_83, %c2_84] : memref<8x4xf32, #tpu.memory_space<smem>>
      %164 = vector.broadcast %163 : f32 to vector<8x128xf32>
      %165 = arith.mulf %19, %164 : vector<8x128xf32>
      %166 = arith.addf %162, %165 : vector<8x128xf32>
      %c4_85 = arith.constant 4 : index
      %c3_86 = arith.constant 3 : index
      %167 = memref.load %arg3[%c4_85, %c3_86] : memref<8x4xf32, #tpu.memory_space<smem>>
      %168 = vector.broadcast %167 : f32 to vector<8x128xf32>
      %169 = arith.mulf %21, %168 : vector<8x128xf32>
      %170 = arith.addf %166, %169 : vector<8x128xf32>
      %c4_87 = arith.constant 4 : index
      %171 = memref.load %arg4[%c4_87] : memref<8xf32, #tpu.memory_space<smem>>
      %172 = vector.broadcast %171 : f32 to vector<8x128xf32>
      %173 = arith.addf %170, %172 : vector<8x128xf32>
      %cst_88 = arith.constant 0.000000e+00 : f32
      %174 = vector.broadcast %cst_88 : f32 to vector<8x128xf32>
      %175 = arith.maximumf %173, %174 : vector<8x128xf32>
      %c0_89 = arith.constant 0 : index
      %c4_90 = arith.constant 4 : index
      %176 = memref.load %arg5[%c0_89, %c4_90] : memref<3x8xf32, #tpu.memory_space<smem>>
      %177 = vector.broadcast %176 : f32 to vector<8x128xf32>
      %178 = arith.mulf %175, %177 : vector<8x128xf32>
      %179 = arith.addf %147, %178 : vector<8x128xf32>
      %c1_91 = arith.constant 1 : index
      %c4_92 = arith.constant 4 : index
      %180 = memref.load %arg5[%c1_91, %c4_92] : memref<3x8xf32, #tpu.memory_space<smem>>
      %181 = vector.broadcast %180 : f32 to vector<8x128xf32>
      %182 = arith.mulf %175, %181 : vector<8x128xf32>
      %183 = arith.addf %151, %182 : vector<8x128xf32>
      %c2_93 = arith.constant 2 : index
      %c4_94 = arith.constant 4 : index
      %184 = memref.load %arg5[%c2_93, %c4_94] : memref<3x8xf32, #tpu.memory_space<smem>>
      %185 = vector.broadcast %184 : f32 to vector<8x128xf32>
      %186 = arith.mulf %175, %185 : vector<8x128xf32>
      %187 = arith.addf %155, %186 : vector<8x128xf32>
      %c5 = arith.constant 5 : index
      %c0_95 = arith.constant 0 : index
      %188 = memref.load %arg3[%c5, %c0_95] : memref<8x4xf32, #tpu.memory_space<smem>>
      %189 = vector.broadcast %188 : f32 to vector<8x128xf32>
      %190 = arith.mulf %15, %189 : vector<8x128xf32>
      %c5_96 = arith.constant 5 : index
      %c1_97 = arith.constant 1 : index
      %191 = memref.load %arg3[%c5_96, %c1_97] : memref<8x4xf32, #tpu.memory_space<smem>>
      %192 = vector.broadcast %191 : f32 to vector<8x128xf32>
      %193 = arith.mulf %17, %192 : vector<8x128xf32>
      %194 = arith.addf %190, %193 : vector<8x128xf32>
      %c5_98 = arith.constant 5 : index
      %c2_99 = arith.constant 2 : index
      %195 = memref.load %arg3[%c5_98, %c2_99] : memref<8x4xf32, #tpu.memory_space<smem>>
      %196 = vector.broadcast %195 : f32 to vector<8x128xf32>
      %197 = arith.mulf %19, %196 : vector<8x128xf32>
      %198 = arith.addf %194, %197 : vector<8x128xf32>
      %c5_100 = arith.constant 5 : index
      %c3_101 = arith.constant 3 : index
      %199 = memref.load %arg3[%c5_100, %c3_101] : memref<8x4xf32, #tpu.memory_space<smem>>
      %200 = vector.broadcast %199 : f32 to vector<8x128xf32>
      %201 = arith.mulf %21, %200 : vector<8x128xf32>
      %202 = arith.addf %198, %201 : vector<8x128xf32>
      %c5_102 = arith.constant 5 : index
      %203 = memref.load %arg4[%c5_102] : memref<8xf32, #tpu.memory_space<smem>>
      %204 = vector.broadcast %203 : f32 to vector<8x128xf32>
      %205 = arith.addf %202, %204 : vector<8x128xf32>
      %cst_103 = arith.constant 0.000000e+00 : f32
      %206 = vector.broadcast %cst_103 : f32 to vector<8x128xf32>
      %207 = arith.maximumf %205, %206 : vector<8x128xf32>
      %c0_104 = arith.constant 0 : index
      %c5_105 = arith.constant 5 : index
      %208 = memref.load %arg5[%c0_104, %c5_105] : memref<3x8xf32, #tpu.memory_space<smem>>
      %209 = vector.broadcast %208 : f32 to vector<8x128xf32>
      %210 = arith.mulf %207, %209 : vector<8x128xf32>
      %211 = arith.addf %179, %210 : vector<8x128xf32>
      %c1_106 = arith.constant 1 : index
      %c5_107 = arith.constant 5 : index
      %212 = memref.load %arg5[%c1_106, %c5_107] : memref<3x8xf32, #tpu.memory_space<smem>>
      %213 = vector.broadcast %212 : f32 to vector<8x128xf32>
      %214 = arith.mulf %207, %213 : vector<8x128xf32>
      %215 = arith.addf %183, %214 : vector<8x128xf32>
      %c2_108 = arith.constant 2 : index
      %c5_109 = arith.constant 5 : index
      %216 = memref.load %arg5[%c2_108, %c5_109] : memref<3x8xf32, #tpu.memory_space<smem>>
      %217 = vector.broadcast %216 : f32 to vector<8x128xf32>
      %218 = arith.mulf %207, %217 : vector<8x128xf32>
      %219 = arith.addf %187, %218 : vector<8x128xf32>
      %c6 = arith.constant 6 : index
      %c0_110 = arith.constant 0 : index
      %220 = memref.load %arg3[%c6, %c0_110] : memref<8x4xf32, #tpu.memory_space<smem>>
      %221 = vector.broadcast %220 : f32 to vector<8x128xf32>
      %222 = arith.mulf %15, %221 : vector<8x128xf32>
      %c6_111 = arith.constant 6 : index
      %c1_112 = arith.constant 1 : index
      %223 = memref.load %arg3[%c6_111, %c1_112] : memref<8x4xf32, #tpu.memory_space<smem>>
      %224 = vector.broadcast %223 : f32 to vector<8x128xf32>
      %225 = arith.mulf %17, %224 : vector<8x128xf32>
      %226 = arith.addf %222, %225 : vector<8x128xf32>
      %c6_113 = arith.constant 6 : index
      %c2_114 = arith.constant 2 : index
      %227 = memref.load %arg3[%c6_113, %c2_114] : memref<8x4xf32, #tpu.memory_space<smem>>
      %228 = vector.broadcast %227 : f32 to vector<8x128xf32>
      %229 = arith.mulf %19, %228 : vector<8x128xf32>
      %230 = arith.addf %226, %229 : vector<8x128xf32>
      %c6_115 = arith.constant 6 : index
      %c3_116 = arith.constant 3 : index
      %231 = memref.load %arg3[%c6_115, %c3_116] : memref<8x4xf32, #tpu.memory_space<smem>>
      %232 = vector.broadcast %231 : f32 to vector<8x128xf32>
      %233 = arith.mulf %21, %232 : vector<8x128xf32>
      %234 = arith.addf %230, %233 : vector<8x128xf32>
      %c6_117 = arith.constant 6 : index
      %235 = memref.load %arg4[%c6_117] : memref<8xf32, #tpu.memory_space<smem>>
      %236 = vector.broadcast %235 : f32 to vector<8x128xf32>
      %237 = arith.addf %234, %236 : vector<8x128xf32>
      %cst_118 = arith.constant 0.000000e+00 : f32
      %238 = vector.broadcast %cst_118 : f32 to vector<8x128xf32>
      %239 = arith.maximumf %237, %238 : vector<8x128xf32>
      %c0_119 = arith.constant 0 : index
      %c6_120 = arith.constant 6 : index
      %240 = memref.load %arg5[%c0_119, %c6_120] : memref<3x8xf32, #tpu.memory_space<smem>>
      %241 = vector.broadcast %240 : f32 to vector<8x128xf32>
      %242 = arith.mulf %239, %241 : vector<8x128xf32>
      %243 = arith.addf %211, %242 : vector<8x128xf32>
      %c1_121 = arith.constant 1 : index
      %c6_122 = arith.constant 6 : index
      %244 = memref.load %arg5[%c1_121, %c6_122] : memref<3x8xf32, #tpu.memory_space<smem>>
      %245 = vector.broadcast %244 : f32 to vector<8x128xf32>
      %246 = arith.mulf %239, %245 : vector<8x128xf32>
      %247 = arith.addf %215, %246 : vector<8x128xf32>
      %c2_123 = arith.constant 2 : index
      %c6_124 = arith.constant 6 : index
      %248 = memref.load %arg5[%c2_123, %c6_124] : memref<3x8xf32, #tpu.memory_space<smem>>
      %249 = vector.broadcast %248 : f32 to vector<8x128xf32>
      %250 = arith.mulf %239, %249 : vector<8x128xf32>
      %251 = arith.addf %219, %250 : vector<8x128xf32>
      %c7 = arith.constant 7 : index
      %c0_125 = arith.constant 0 : index
      %252 = memref.load %arg3[%c7, %c0_125] : memref<8x4xf32, #tpu.memory_space<smem>>
      %253 = vector.broadcast %252 : f32 to vector<8x128xf32>
      %254 = arith.mulf %15, %253 : vector<8x128xf32>
      %c7_126 = arith.constant 7 : index
      %c1_127 = arith.constant 1 : index
      %255 = memref.load %arg3[%c7_126, %c1_127] : memref<8x4xf32, #tpu.memory_space<smem>>
      %256 = vector.broadcast %255 : f32 to vector<8x128xf32>
      %257 = arith.mulf %17, %256 : vector<8x128xf32>
      %258 = arith.addf %254, %257 : vector<8x128xf32>
      %c7_128 = arith.constant 7 : index
      %c2_129 = arith.constant 2 : index
      %259 = memref.load %arg3[%c7_128, %c2_129] : memref<8x4xf32, #tpu.memory_space<smem>>
      %260 = vector.broadcast %259 : f32 to vector<8x128xf32>
      %261 = arith.mulf %19, %260 : vector<8x128xf32>
      %262 = arith.addf %258, %261 : vector<8x128xf32>
      %c7_130 = arith.constant 7 : index
      %c3_131 = arith.constant 3 : index
      %263 = memref.load %arg3[%c7_130, %c3_131] : memref<8x4xf32, #tpu.memory_space<smem>>
      %264 = vector.broadcast %263 : f32 to vector<8x128xf32>
      %265 = arith.mulf %21, %264 : vector<8x128xf32>
      %266 = arith.addf %262, %265 : vector<8x128xf32>
      %c7_132 = arith.constant 7 : index
      %267 = memref.load %arg4[%c7_132] : memref<8xf32, #tpu.memory_space<smem>>
      %268 = vector.broadcast %267 : f32 to vector<8x128xf32>
      %269 = arith.addf %266, %268 : vector<8x128xf32>
      %cst_133 = arith.constant 0.000000e+00 : f32
      %270 = vector.broadcast %cst_133 : f32 to vector<8x128xf32>
      %271 = arith.maximumf %269, %270 : vector<8x128xf32>
      %c0_134 = arith.constant 0 : index
      %c7_135 = arith.constant 7 : index
      %272 = memref.load %arg5[%c0_134, %c7_135] : memref<3x8xf32, #tpu.memory_space<smem>>
      %273 = vector.broadcast %272 : f32 to vector<8x128xf32>
      %274 = arith.mulf %271, %273 : vector<8x128xf32>
      %275 = arith.addf %243, %274 : vector<8x128xf32>
      %c1_136 = arith.constant 1 : index
      %c7_137 = arith.constant 7 : index
      %276 = memref.load %arg5[%c1_136, %c7_137] : memref<3x8xf32, #tpu.memory_space<smem>>
      %277 = vector.broadcast %276 : f32 to vector<8x128xf32>
      %278 = arith.mulf %271, %277 : vector<8x128xf32>
      %279 = arith.addf %247, %278 : vector<8x128xf32>
      %c2_138 = arith.constant 2 : index
      %c7_139 = arith.constant 7 : index
      %280 = memref.load %arg5[%c2_138, %c7_139] : memref<3x8xf32, #tpu.memory_space<smem>>
      %281 = vector.broadcast %280 : f32 to vector<8x128xf32>
      %282 = arith.mulf %271, %281 : vector<8x128xf32>
      %283 = arith.addf %251, %282 : vector<8x128xf32>
      %284 = tpu.iota {dimensions = array<i32: 0>} : vector<8x128xi32>
      %285 = tpu.iota {dimensions = array<i32: 1>} : vector<8x128xi32>
      %c8_i32 = arith.constant 8 : i32
      %286 = arith.muli %arg1, %c8_i32 : i32
      %c0_i32_140 = arith.constant 0 : i32
      %287 = arith.addi %286, %c0_i32_140 : i32
      %288 = vector.broadcast %287 : i32 to vector<8x128xi32>
      %289 = arith.addi %288, %284 : vector<8x128xi32>
      %c128_i32 = arith.constant 128 : i32
      %290 = vector.broadcast %c128_i32 : i32 to vector<8x128xi32>
      %291 = arith.muli %289, %290 : vector<8x128xi32>
      %292 = arith.addi %291, %285 : vector<8x128xi32>
      %c8_i32_141 = arith.constant 8 : i32
      %293 = vector.broadcast %c8_i32_141 : i32 to vector<8x128xi32>
      %294 = arith.cmpi slt, %292, %293 : vector<8x128xi32>
      %c0_142 = arith.constant 0 : index
      %c0_143 = arith.constant 0 : index
      %c0_144 = arith.constant 0 : index
      %295 = vector.load %arg10[%c0_142, %c0_143, %c0_144] : memref<3x1x128xf32, #tpu.memory_space<vmem>>, vector<1x1x128xf32>
      %296 = vector.shape_cast %295 : vector<1x1x128xf32> to vector<1x128xf32>
      %297 = vector.broadcast %296 : vector<1x128xf32> to vector<8x128xf32>
      %298 = arith.subf %275, %297 : vector<8x128xf32>
      %299 = math.exp %298 : vector<8x128xf32>
      %cst_145 = arith.constant 0.000000e+00 : f32
      %300 = vector.broadcast %cst_145 : f32 to vector<8x128xf32>
      %301 = arith.select %294, %299, %300 : vector<8x128xi1>, vector<8x128xf32>
      %c0_146 = arith.constant 0 : index
      %c0_147 = arith.constant 0 : index
      %c0_148 = arith.constant 0 : index
      %302 = vector.load %arg7[%c0_146, %c0_147, %c0_148] : memref<3x8x128xf32, #tpu.memory_space<vmem>>, vector<1x8x128xf32>
      %303 = vector.shape_cast %302 : vector<1x8x128xf32> to vector<8x128xf32>
      %304 = vector.shape_cast %301 : vector<8x128xf32> to vector<1x8x128xf32>
      tpu.vector_store %arg7[%c0_146, %c0_147, %c0_148], %304 {strides = array<i32>} : memref<3x8x128xf32, #tpu.memory_space<vmem>>, vector<1x8x128xf32>,
      %c1_149 = arith.constant 1 : index
      %c0_150 = arith.constant 0 : index
      %c0_151 = arith.constant 0 : index
      %305 = vector.load %arg10[%c1_149, %c0_150, %c0_151] : memref<3x1x128xf32, #tpu.memory_space<vmem>>, vector<1x1x128xf32>
      %306 = vector.shape_cast %305 : vector<1x1x128xf32> to vector<1x128xf32>
      %307 = vector.broadcast %306 : vector<1x128xf32> to vector<8x128xf32>
      %308 = arith.subf %279, %307 : vector<8x128xf32>
      %309 = math.exp %308 : vector<8x128xf32>
      %cst_152 = arith.constant 0.000000e+00 : f32
      %310 = vector.broadcast %cst_152 : f32 to vector<8x128xf32>
      %311 = arith.select %294, %309, %310 : vector<8x128xi1>, vector<8x128xf32>
      %c1_153 = arith.constant 1 : index
      %c0_154 = arith.constant 0 : index
      %c0_155 = arith.constant 0 : index
      %312 = vector.load %arg7[%c1_153, %c0_154, %c0_155] : memref<3x8x128xf32, #tpu.memory_space<vmem>>, vector<1x8x128xf32>
      %313 = vector.shape_cast %312 : vector<1x8x128xf32> to vector<8x128xf32>
      %314 = vector.shape_cast %311 : vector<8x128xf32> to vector<1x8x128xf32>
      tpu.vector_store %arg7[%c1_153, %c0_154, %c0_155], %314 {strides = array<i32>} : memref<3x8x128xf32, #tpu.memory_space<vmem>>, vector<1x8x128xf32>,
      %c2_156 = arith.constant 2 : index
      %c0_157 = arith.constant 0 : index
      %c0_158 = arith.constant 0 : index
      %315 = vector.load %arg10[%c2_156, %c0_157, %c0_158] : memref<3x1x128xf32, #tpu.memory_space<vmem>>, vector<1x1x128xf32>
      %316 = vector.shape_cast %315 : vector<1x1x128xf32> to vector<1x128xf32>
      %317 = vector.broadcast %316 : vector<1x128xf32> to vector<8x128xf32>
      %318 = arith.subf %283, %317 : vector<8x128xf32>
      %319 = math.exp %318 : vector<8x128xf32>
      %cst_159 = arith.constant 0.000000e+00 : f32
      %320 = vector.broadcast %cst_159 : f32 to vector<8x128xf32>
      %321 = arith.select %294, %319, %320 : vector<8x128xi1>, vector<8x128xf32>
      %c2_160 = arith.constant 2 : index
      %c0_161 = arith.constant 0 : index
      %c0_162 = arith.constant 0 : index
      %322 = vector.load %arg7[%c2_160, %c0_161, %c0_162] : memref<3x8x128xf32, #tpu.memory_space<vmem>>, vector<1x8x128xf32>
      %323 = vector.shape_cast %322 : vector<1x8x128xf32> to vector<8x128xf32>
      %324 = vector.shape_cast %321 : vector<8x128xf32> to vector<1x8x128xf32>
      tpu.vector_store %arg7[%c2_160, %c0_161, %c0_162], %324 {strides = array<i32>} : memref<3x8x128xf32, #tpu.memory_space<vmem>>, vector<1x8x128xf32>,
    } else {
    }
    return
  }
  func.func @transform_0(%arg0: i32, %arg1: i32) -> (i32, i32, i32) {
    %c0_i32 = arith.constant 0 : i32
    %c0_i32_0 = arith.constant 0 : i32
    %c0_i32_1 = arith.constant 0 : i32
    return %c0_i32, %arg1, %c0_i32_0 : i32, i32, i32
  }
  func.func @transform_1(%arg0: i32, %arg1: i32) -> (i32, i32) {
    %c0_i32 = arith.constant 0 : i32
    %c0_i32_0 = arith.constant 0 : i32
    %c0_i32_1 = arith.constant 0 : i32
    return %c0_i32, %c0_i32_0 : i32, i32
  }
  func.func @transform_2(%arg0: i32, %arg1: i32) -> i32 {
    %c0_i32 = arith.constant 0 : i32
    %c0_i32_0 = arith.constant 0 : i32
    return %c0_i32 : i32
  }
  func.func @transform_3(%arg0: i32, %arg1: i32) -> (i32, i32) {
    %c0_i32 = arith.constant 0 : i32
    %c0_i32_0 = arith.constant 0 : i32
    %c0_i32_1 = arith.constant 0 : i32
    return %c0_i32, %c0_i32_0 : i32, i32
  }
  func.func @transform_4(%arg0: i32, %arg1: i32) -> i32 {
    %c0_i32 = arith.constant 0 : i32
    %c0_i32_0 = arith.constant 0 : i32
    return %c0_i32 : i32
  }
  func.func @transform_5(%arg0: i32, %arg1: i32) -> (i32, i32, i32) {
    %0 = arith.muli %arg1, %arg0 : i32
    %c0_i32 = arith.constant 0 : i32
    %c0_i32_0 = arith.constant 0 : i32
    %c0_i32_1 = arith.constant 0 : i32
    return %c0_i32, %0, %c0_i32_0 : i32, i32, i32
  }
}

</mosaic_0001>

<llo_original>
// kernel: tpu_custom_call.1
$region0: #{tpu_custom_call.1}
  #allocation0 [shape = 'u32[]', space=smem, size = 0x4, offset = 0x4, fixed_abs, tag = 'smem constant byte address 0x4 - core index']
  #allocation1 [shape = 'u32[144,128]{1,0:T(1,128)}', space=vmem, size = 0x12000, scoped, tag = 'internal scratch']
  #allocation2 [shape = 'f32[3,8,128]{2,1,0:T(8,128)}', space=vmem, size = 0x3000, scoped, tag = 'scratch operand']
  #allocation3 [shape = 'f32[3,8,128]{2,1,0:T(8,128)}', space=vmem, size = 0x3000, scoped, tag = 'scratch operand']
  #allocation4 [shape = 'f32[3,1,128]{2,1,0:T(1,128)}', space=vmem, size = 0x600, scoped, tag = 'scratch operand']
  %s0 = inlined_call_operand.hbm [shape: f32[4,8,128], index: 0, kind: input, shape index: {}]
  %s1 = inlined_call_operand.vmem [shape: f32[8,4], index: 1, kind: input, shape index: {}]
  %s2 = inlined_call_operand.vmem [shape: f32[8], index: 2, kind: input, shape index: {}]
  %s3 = inlined_call_operand.vmem [shape: f32[3,8], index: 3, kind: input, shape index: {}]
  %s4 = inlined_call_operand.vmem [shape: f32[3], index: 4, kind: input, shape index: {}]
  %s5 = inlined_call_operand.hbm [shape: f32[3,8,128], index: 5, kind: output, shape index: {}]
  %s6 = sld [smem:[#allocation0]]
  $region81: #{tpu_custom_call.1} parent=0
    _
  %s8 = ssub.s32 1, %s6
  %s9 = scalar_select 0, %s8, %s6
  $region1: #{tpu_custom_call.1} parent=0
    #allocation5 [shape = 'u8[16384]{0}', space=vmem, size = 0x4000, scoped, tag = 'input window, operand 0, single buffered']
    #allocation6 [shape = 's32[2]{0}', space=sflag, size = 0x8, scoped, tag = 'scoped memory for tpu_custom_call.1']
    #allocation7 [shape = 's32[2]{0}', space=sflag, size = 0x8, scoped, tag = 'scoped memory for tpu_custom_call.1']
    #allocation8 [shape = 's32[2]{0}', space=sflag, size = 0x8, scoped, tag = 'scoped memory for tpu_custom_call.1']
    #allocation9 [shape = 'u8[4096]{0}', space=smem, size = 0x1000, scoped, tag = 'input window, operand 1, single buffered']
    #allocation10 [shape = 'u8[512]{0}', space=smem, size = 0x200, scoped, tag = 'input window, operand 2, single buffered']
    #allocation11 [shape = 's32[1]{0}', space=sflag, size = 0x4, scoped, tag = 'scoped memory for tpu_custom_call.1']
    #allocation12 [shape = 'u8[2048]{0}', space=smem, size = 0x800, scoped, tag = 'input window, operand 3, single buffered']
    #allocation13 [shape = 'u8[512]{0}', space=smem, size = 0x200, scoped, tag = 'input window, operand 4, single buffered']
    #allocation14 [shape = 's32[1]{0}', space=sflag, size = 0x4, scoped, tag = 'scoped memory for tpu_custom_call.1']
    #allocation15 [shape = 'u8[24576]{0}', space=vmem, size = 0x6000, scoped, tag = 'output window, operand 0']
    %10 = vsyncpa [#allocation6], 0
    %11 = vsyncpa [#allocation8], 0
    %12 = vsyncpa [#allocation11], 0
    %13 = vsyncpa [#allocation14], 0
    %14 = vsyncpa [#allocation7], 0
    %s15 = scalar_lea.sflag [#allocation7], 1
    %16 = vsyncpa %s15, 0
    loop: start=0, step=1, limit=4
    $region2: #{tpu_custom_call.1} parent=1 // loop_pre_header
      _
    $region3: #{tpu_custom_call.1} parent=1 // loop_header
      %s18 = sphi 0, %s22
      %p19 = scmp.ge.s32.totalorder %s18, 4
      %s25 = sphi 0, %s37
      %s26 = sphi 0, %s33
      %s27 = sphi 0, %s25
      %s28 = sphi 0, %s26
      %s29 = sphi 0, %s27
      %s30 = sphi 0, %s28
      %s40 = sphi 0, %s42
      %s43 = sphi 0, %s40
      %s44 = sphi 0, %s43
      %s60 = sphi 0, %s44
      %s64 = sphi 0, %s64
      %s66 = sphi 0, %s64
      %s67 = sphi 0, %s66
      %s81 = sphi 0, %s67
      %s85 = sphi 0, %s85
      %s87 = sphi 0, %s85
      %s88 = sphi 0, %s87
      %s102 = sphi 0, %s88
      %s106 = sphi 0, %s106
      %s108 = sphi 0, %s106
      %s109 = sphi 0, %s108
      %s123 = sphi 0, %s109
      %s127 = sphi 0, %s127
      %s129 = sphi 0, %s127
      %s130 = sphi 0, %s129
      %s144 = sphi 0, %s130
      %s152 = sphi 0, %s154
      %s155 = sphi 0, %s152
      %s156 = sphi 0, %s155
      %s172 = sphi 0, %s156
    $region4: #{tpu_custom_call.1} parent=1 // loop_header_branch
      %21 = sbr.rel (%p19) target = $region8
    $region5: #{tpu_custom_call.1} parent=1 // loop_body
      %s23 = ssub.s32 %s18, 1
      %s24 = ssub.s32 %s18, 2
      %s31 = sadd.s32 1, %s26
      %p32 = scmp.ge.s32.totalorder %s31, 1
      %s33 = scalar_select %p32, 0, %s31
      %s34 = sadd.s32 1, %s25
      %s35 = scalar_select %p32, %s34, %s25
      %p36 = scmp.ge.s32.totalorder %s35, 2
      %s37 = scalar_select %p36, 0, %s35
      %s38 = ssub.s32 %s26, %s33
      %p39 = scmp.eq.s32.totalorder %s38, 0
      %s41 = sadd.s32 %s40, 1
      %s42 = scalar_select %p39, %s40, %s41
      %p45 = pneg %p39
      %p46 = scmp.eq.s32.totalorder %s18, 1
      %p47 = por %p45, %p46
      %p48 = scmp.ne.s32.totalorder %s40, %s43
      %p49 = scmp.eq.s32.totalorder %s18, 0
      %p50 = por %p48, %p49
      %p51 = scmp.ne.s32.totalorder %s40, %s43
      %p52 = scmp.eq.s32.totalorder %s23, 1
      %p53 = por %p51, %p52
      %p54 = scmp.ne.s32.totalorder %s43, %s44
      %p55 = scmp.eq.s32.totalorder %s23, 0
      %p56 = por %p54, %p55
      %p57 = scmp.ne.s32.totalorder %s43, %s44
      %p58 = scmp.eq.s32.totalorder %s24, 1
      %p59 = por %p57, %p58
      %p61 = scmp.ne.s32.totalorder %s44, %s60
      %p62 = scmp.eq.s32.totalorder %s24, 0
      %p63 = por %p61, %p62
      %s65 = sadd.s32 %s64, 1
      %p68 = scmp.eq.s32.totalorder %s18, 1
      %p69 = scmp.ne.s32.totalorder %s64, %s66
      %p70 = scmp.eq.s32.totalorder %s18, 0
      %p71 = por %p69, %p70
      %p72 = scmp.ne.s32.totalorder %s64, %s66
      %p73 = scmp.eq.s32.totalorder %s23, 1
      %p74 = por %p72, %p73
      %p75 = scmp.ne.s32.totalorder %s66, %s67
      %p76 = scmp.eq.s32.totalorder %s23, 0
      %p77 = por %p75, %p76
      %p78 = scmp.ne.s32.totalorder %s66, %s67
      %p79 = scmp.eq.s32.totalorder %s24, 1
      %p80 = por %p78, %p79
      %p82 = scmp.ne.s32.totalorder %s67, %s81
      %p83 = scmp.eq.s32.totalorder %s24, 0
      %p84 = por %p82, %p83
      %s86 = sadd.s32 %s85, 1
      %p89 = scmp.eq.s32.totalorder %s18, 1
      %p90 = scmp.ne.s32.totalorder %s85, %s87
      %p91 = scmp.eq.s32.totalorder %s18, 0
      %p92 = por %p90, %p91
      %p93 = scmp.ne.s32.totalorder %s85, %s87
      %p94 = scmp.eq.s32.totalorder %s23, 1
      %p95 = por %p93, %p94
      %p96 = scmp.ne.s32.totalorder %s87, %s88
      %p97 = scmp.eq.s32.totalorder %s23, 0
      %p98 = por %p96, %p97
      %p99 = scmp.ne.s32.totalorder %s87, %s88
      %p100 = scmp.eq.s32.totalorder %s24, 1
      %p101 = por %p99, %p100
      %p103 = scmp.ne.s32.totalorder %s88, %s102
      %p104 = scmp.eq.s32.totalorder %s24, 0
      %p105 = por %p103, %p104
      %s107 = sadd.s32 %s106, 1
      %p110 = scmp.eq.s32.totalorder %s18, 1
      %p111 = scmp.ne.s32.totalorder %s106, %s108
      %p112 = scmp.eq.s32.totalorder %s18, 0
      %p113 = por %p111, %p112
      %p114 = scmp.ne.s32.totalorder %s106, %s108
      %p115 = scmp.eq.s32.totalorder %s23, 1
      %p116 = por %p114, %p115
      %p117 = scmp.ne.s32.totalorder %s108, %s109
      %p118 = scmp.eq.s32.totalorder %s23, 0
      %p119 = por %p117, %p118
      %p120 = scmp.ne.s32.totalorder %s108, %s109
      %p121 = scmp.eq.s32.totalorder %s24, 1
      %p122 = por %p120, %p121
      %p124 = scmp.ne.s32.totalorder %s109, %s123
      %p125 = scmp.eq.s32.totalorder %s24, 0
      %p126 = por %p124, %p125
      %s128 = sadd.s32 %s127, 1
      %p131 = scmp.eq.s32.totalorder %s18, 1
      %p132 = scmp.ne.s32.totalorder %s127, %s129
      %p133 = scmp.eq.s32.totalorder %s18, 0
      %p134 = por %p132, %p133
      %p135 = scmp.ne.s32.totalorder %s127, %s129
      %p136 = scmp.eq.s32.totalorder %s23, 1
      %p137 = por %p135, %p136
      %p138 = scmp.ne.s32.totalorder %s129, %s130
      %p139 = scmp.eq.s32.totalorder %s23, 0
      %p140 = por %p138, %p139
      %p141 = scmp.ne.s32.totalorder %s129, %s130
      %p142 = scmp.eq.s32.totalorder %s24, 1
      %p143 = por %p141, %p142
      %p145 = scmp.ne.s32.totalorder %s130, %s144
      %p146 = scmp.eq.s32.totalorder %s24, 0
      %p147 = por %p145, %p146
      %s148 = smul.u32 %s26, %s25
      %s149 = smul.u32 %s33, %s37
      %s150 = ssub.s32 %s148, %s149
      %p151 = scmp.eq.s32.totalorder %s150, 0
      %s153 = sadd.s32 %s152, 1
      %s154 = scalar_select %p151, %s152, %s153
      %p157 = pneg %p151
      %p158 = scmp.eq.s32.totalorder %s18, 1
      %p159 = por %p157, %p158
      %p160 = scmp.ne.s32.totalorder %s152, %s155
      %p161 = scmp.eq.s32.totalorder %s18, 0
      %p162 = por %p160, %p161
      %p163 = scmp.ne.s32.totalorder %s152, %s155
      %p164 = scmp.eq.s32.totalorder %s23, 1
      %p165 = por %p163, %p164
      %p166 = scmp.ne.s32.totalorder %s155, %s156
      %p167 = scmp.eq.s32.totalorder %s23, 0
      %p168 = por %p166, %p167
      %p169 = scmp.ne.s32.totalorder %s155, %s156
      %p170 = scmp.eq.s32.totalorder %s24, 1
      %p171 = por %p169, %p170
      %p173 = scmp.ne.s32.totalorder %s156, %s172
      %p174 = scmp.eq.s32.totalorder %s24, 0
      %p175 = por %p173, %p174
      %p176 = scmp.le.s32.totalorder 1, %s18
      %p177 = scmp.lt.s32.totalorder %s18, 3
      %p178 = pnand %p176, %p177
      %p179 = pneg %p178
      // Predicated region
      $region9: #{tpu_custom_call.1} parent=5 // pred_check
        _
      $region10: #{tpu_custom_call.1} parent=5 // pred_check_branch
        %181 = sbr.rel (%p178) target = $region12
      $region11: #{tpu_custom_call.1} parent=5 // pred_region
        %s182 = ssub.s32 %s18, 1
        // Predicated region
        $region13: #{tpu_custom_call.1} parent=11 // pred_check
          %p183 = pneg %p56
        $region14: #{tpu_custom_call.1} parent=11 // pred_check_branch
          %185 = sbr.rel (%p183) target = $region16
        $region15: #{tpu_custom_call.1} parent=11 // pred_region
          %s187 = ssub.s32 512, 512
          %188 = vsyncadd [#allocation6], %s187
          %s189 = smul.addr %s28, 128
          %s190 = scalar_lea.hbm %s0, %s189
          %s191 = sshll.u32 [#allocation5], 4
          %s192 = int_to_ptr.vmem [resolvable:$true] %s191
          %197 = dma.hbm_to_vmem [thread:$0]  %s190, 512, %s192, [#allocation6], 128, 128, 8
        $region16: #{tpu_custom_call.1} parent=11 // pred_fallthru
          _
        // Predicated region
        $region17: #{tpu_custom_call.1} parent=11 // pred_check
          %p198 = pneg %p77
        $region18: #{tpu_custom_call.1} parent=11 // pred_check_branch
          %200 = sbr.rel (%p198) target = $region20
        $region19: #{tpu_custom_call.1} parent=11 // pred_region
          %s202 = ssub.s32 128, 128
          %203 = vsyncadd [#allocation8], %s202
          %s205 = sshll.u32 %s1, 4
          %s206 = int_to_ptr.vmem [resolvable:$true] %s205
          %208 = dma.vmem_to_smem %s206, 128, [#allocation9], [#allocation8]
        $region20: #{tpu_custom_call.1} parent=11 // pred_fallthru
          _
        // Predicated region
        $region21: #{tpu_custom_call.1} parent=11 // pred_check
          %p209 = pneg %p98
        $region22: #{tpu_custom_call.1} parent=11 // pred_check_branch
          %211 = sbr.rel (%p209) target = $region24
        $region23: #{tpu_custom_call.1} parent=11 // pred_region
          %s213 = ssub.s32 16, 16
          %214 = vsyncadd [#allocation11], %s213
          %s216 = sshll.u32 %s2, 4
          %s217 = int_to_ptr.vmem [resolvable:$true] %s216
          %219 = dma.vmem_to_smem %s217, 16, [#allocation10], [#allocation11]
        $region24: #{tpu_custom_call.1} parent=11 // pred_fallthru
          _
        // Predicated region
        $region25: #{tpu_custom_call.1} parent=11 // pred_check
          %p220 = pneg %p119
        $region26: #{tpu_custom_call.1} parent=11 // pred_check_branch
          %222 = sbr.rel (%p220) target = $region28
        $region27: #{tpu_custom_call.1} parent=11 // pred_region
          %s224 = ssub.s32 64, 64
          %225 = vsyncadd [#allocation11], %s224
          %s227 = sshll.u32 %s3, 4
          %s228 = int_to_ptr.vmem [resolvable:$true] %s227
          %230 = dma.vmem_to_smem %s228, 64, [#allocation12], [#allocation11]
        $region28: #{tpu_custom_call.1} parent=11 // pred_fallthru
          _
        // Predicated region
        $region29: #{tpu_custom_call.1} parent=11 // pred_check
          %p231 = pneg %p140
        $region30: #{tpu_custom_call.1} parent=11 // pred_check_branch
          %233 = sbr.rel (%p231) target = $region32
        $region31: #{tpu_custom_call.1} parent=11 // pred_region
          %s235 = ssub.s32 16, 16
          %236 = vsyncadd [#allocation14], %s235
          %s238 = sshll.u32 %s4, 4
          %s239 = int_to_ptr.vmem [resolvable:$true] %s238
          %241 = dma.vmem_to_smem %s239, 16, [#allocation13], [#allocation14]
        $region32: #{tpu_custom_call.1} parent=11 // pred_fallthru
          _
      $region12: #{tpu_custom_call.1} parent=5 // pred_fallthru
        _
      %p242 = scmp.lt.s32.totalorder %s18, 2
      // Predicated region
      $region33: #{tpu_custom_call.1} parent=5 // pred_check
        %p243 = pneg %p242
      $region34: #{tpu_custom_call.1} parent=5 // pred_check_branch
        %245 = sbr.rel (%p243) target = $region36
      $region35: #{tpu_custom_call.1} parent=5 // pred_region
        _
      $region36: #{tpu_custom_call.1} parent=5 // pred_fallthru
        _
      %p246 = scmp.le.s32.totalorder 1, %s18
      %p247 = scmp.lt.s32.totalorder %s18, 3
      %p248 = pnand %p246, %p247
      %p249 = pneg %p248
      // Predicated region
      $region37: #{tpu_custom_call.1} parent=5 // pred_check
        _
      $region38: #{tpu_custom_call.1} parent=5 // pred_check_branch
        %251 = sbr.rel (%p248) target = $region40
      $region39: #{tpu_custom_call.1} parent=5 // pred_region
        %s252 = ssub.s32 %s18, 1
        // Predicated region
        $region41: #{tpu_custom_call.1} parent=39 // pred_check
          %p253 = pneg %p56
        $region42: #{tpu_custom_call.1} parent=39 // pred_check_branch
          %255 = sbr.rel (%p253) target = $region44
        $region43: #{tpu_custom_call.1} parent=39 // pred_region
          %256 = dma.done [#allocation6], 512
        $region44: #{tpu_custom_call.1} parent=39 // pred_fallthru
          _
        // Predicated region
        $region45: #{tpu_custom_call.1} parent=39 // pred_check
          %p257 = pneg %p77
        $region46: #{tpu_custom_call.1} parent=39 // pred_check_branch
          %259 = sbr.rel (%p257) target = $region48
        $region47: #{tpu_custom_call.1} parent=39 // pred_region
          %260 = dma.done [#allocation8], 128
        $region48: #{tpu_custom_call.1} parent=39 // pred_fallthru
          _
        // Predicated region
        $region49: #{tpu_custom_call.1} parent=39 // pred_check
          %p261 = pneg %p98
        $region50: #{tpu_custom_call.1} parent=39 // pred_check_branch
          %263 = sbr.rel (%p261) target = $region52
        $region51: #{tpu_custom_call.1} parent=39 // pred_region
          %264 = dma.done [#allocation11], 16
        $region52: #{tpu_custom_call.1} parent=39 // pred_fallthru
          _
        // Predicated region
        $region53: #{tpu_custom_call.1} parent=39 // pred_check
          %p265 = pneg %p119
        $region54: #{tpu_custom_call.1} parent=39 // pred_check_branch
          %267 = sbr.rel (%p265) target = $region56
        $region55: #{tpu_custom_call.1} parent=39 // pred_region
          %268 = dma.done [#allocation11], 64
        $region56: #{tpu_custom_call.1} parent=39 // pred_fallthru
          _
        // Predicated region
        $region57: #{tpu_custom_call.1} parent=39 // pred_check
          %p269 = pneg %p140
        $region58: #{tpu_custom_call.1} parent=39 // pred_check_branch
          %271 = sbr.rel (%p269) target = $region60
        $region59: #{tpu_custom_call.1} parent=39 // pred_region
          %272 = dma.done [#allocation14], 16
        $region60: #{tpu_custom_call.1} parent=39 // pred_fallthru
          _
        %273 = sfence
        %p274 = pneg %p56
        %p275 = pneg %p53
        %p276 = pneg %p77
        %p277 = pneg %p74
        %p278 = pneg %p98
        %p279 = pneg %p95
        %p280 = pneg %p119
        %p281 = pneg %p116
        %p282 = pneg %p140
        %p283 = pneg %p137
        %p284 = pneg %p168
        %p285 = pneg %p165
        %s286 = sand.u32 %s155, 1
        %s287 = scalar_lea.sflag [#allocation7], %s286
        %s288 = sand.u32 %s155, 1
        %s289 = smul.addr %s288, 24
        %s290 = scalar_lea.vmem [#allocation15], %s289
        %s291 = smul.u32 %s28, %s27
        %p292 = scmp.eq.s32.totalorder %s28, 0
        %p293 = scmp.eq.s32.totalorder %s27, 0
        %p294 = pnand %p293, %p292
        %p295 = pneg %p294
        // Predicated region
        $region61: #{tpu_custom_call.1} parent=39 // pred_check
          _
        $region62: #{tpu_custom_call.1} parent=39 // pred_check_branch
          %297 = sbr.rel (%p294) target = $region64
        $region63: #{tpu_custom_call.1} parent=39 // pred_region
          %298 = vst [vmem:[#allocation2] sm:$0xff] -1e+30
          %299 = vst [vmem:[#allocation2 + $0x8] sm:$0xff] -1e+30
          %300 = vst [vmem:[#allocation2 + $0x10] sm:$0xff] -1e+30
          %301 = vst [vmem:[#allocation3] sm:$0xff] 0.0
          %302 = vst [vmem:[#allocation3 + $0x8] sm:$0xff] 0.0
          %303 = vst [vmem:[#allocation3 + $0x10] sm:$0xff] 0.0
          %v304 = vld [vmem:[#allocation5] sm:$0xff]
          %s305 = scalar_lea.vmem [#allocation5], 8
          %v306 = vld [vmem:[%s305] sm:$0xff]
          %s307 = scalar_lea.vmem [#allocation5], 16
          %v308 = vld [vmem:[%s307] sm:$0xff]
          %s309 = scalar_lea.vmem [#allocation5], 24
          %v310 = vld [vmem:[%s309] sm:$0xff]
          %s311 = sld [smem:[#allocation9]]
          %v312 = vstv %s311
          %v313 = vmul.f32 %v304, %v312
          %s314 = sld [smem:[#allocation9 + $0x1]]
          %v315 = vstv %s314
          %v316 = vmul.f32 %v306, %v315
          %v317 = vadd.f32 %v313, %v316
          %s318 = sld [smem:[#allocation9 + $0x2]]
          %v319 = vstv %s318
          %v320 = vmul.f32 %v308, %v319
          %v321 = vadd.f32 %v317, %v320
          %s322 = sld [smem:[#allocation9 + $0x3]]
          %v323 = vstv %s322
          %v324 = vmul.f32 %v310, %v323
          %v325 = vadd.f32 %v321, %v324
          %s326 = sld [smem:[#allocation10]]
          %v327 = vstv %s326
          %v328 = vadd.f32 %v325, %v327
          %v329 = vmax.f32 %v328, 0.0
          %s330 = sld [smem:[#allocation12]]
          %v331 = vstv %s330
          %v332 = vmul.f32 %v329, %v331
          %s333 = sld [smem:[#allocation13]]
          %v334 = vstv %s333
          %v335 = vadd.f32 %v332, %v334
          %s336 = sld [smem:[#allocation12 + $0x80]]
          %v337 = vstv %s336
          %v338 = vmul.f32 %v329, %v337
          %s339 = sld [smem:[#allocation13 + $0x1]]
          %v340 = vstv %s339
          %v341 = vadd.f32 %v338, %v340
          %s342 = sld [smem:[#allocation12 + $0x100]]
          %v343 = vstv %s342
          %v344 = vmul.f32 %v329, %v343
          %s345 = sld [smem:[#allocation13 + $0x2]]
          %v346 = vstv %s345
          %v347 = vadd.f32 %v344, %v346
          %s348 = sld [smem:[#allocation9 + $0x80]]
          %v349 = vstv %s348
          %v350 = vmul.f32 %v304, %v349
          %s351 = sld [smem:[#allocation9 + $0x81]]
          %v352 = vstv %s351
          %v353 = vmul.f32 %v306, %v352
          %v354 = vadd.f32 %v350, %v353
          %s355 = sld [smem:[#allocation9 + $0x82]]
          %v356 = vstv %s355
          %v357 = vmul.f32 %v308, %v356
          %v358 = vadd.f32 %v354, %v357
          %s359 = sld [smem:[#allocation9 + $0x83]]
          %v360 = vstv %s359
          %v361 = vmul.f32 %v310, %v360
          %v362 = vadd.f32 %v358, %v361
          %s363 = sld [smem:[#allocation10 + $0x1]]
          %v364 = vstv %s363
          %v365 = vadd.f32 %v362, %v364
          %v366 = vmax.f32 %v365, 0.0
          %s367 = sld [smem:[#allocation12 + $0x1]]
          %v368 = vstv %s367
          %v369 = vmul.f32 %v366, %v368
          %v370 = vadd.f32 %v335, %v369
          %s371 = sld [smem:[#allocation12 + $0x81]]
          %v372 = vstv %s371
          %v373 = vmul.f32 %v366, %v372
          %v374 = vadd.f32 %v341, %v373
          %s375 = sld [smem:[#allocation12 + $0x101]]
          %v376 = vstv %s375
          %v377 = vmul.f32 %v366, %v376
          %v378 = vadd.f32 %v347, %v377
          %s379 = sld [smem:[#allocation9 + $0x100]]
          %v380 = vstv %s379
          %v381 = vmul.f32 %v304, %v380
          %s382 = sld [smem:[#allocation9 + $0x101]]
          %v383 = vstv %s382
          %v384 = vmul.f32 %v306, %v383
          %v385 = vadd.f32 %v381, %v384
          %s386 = sld [smem:[#allocation9 + $0x102]]
          %v387 = vstv %s386
          %v388 = vmul.f32 %v308, %v387
          %v389 = vadd.f32 %v385, %v388
          %s390 = sld [smem:[#allocation9 + $0x103]]
          %v391 = vstv %s390
          %v392 = vmul.f32 %v310, %v391
          %v393 = vadd.f32 %v389, %v392
          %s394 = sld [smem:[#allocation10 + $0x2]]
          %v395 = vstv %s394
          %v396 = vadd.f32 %v393, %v395
          %v397 = vmax.f32 %v396, 0.0
          %s398 = sld [smem:[#allocation12 + $0x2]]
          %v399 = vstv %s398
          %v400 = vmul.f32 %v397, %v399
          %v401 = vadd.f32 %v370, %v400
          %s402 = sld [smem:[#allocation12 + $0x82]]
          %v403 = vstv %s402
          %v404 = vmul.f32 %v397, %v403
          %v405 = vadd.f32 %v374, %v404
          %s406 = sld [smem:[#allocation12 + $0x102]]
          %v407 = vstv %s406
          %v408 = vmul.f32 %v397, %v407
          %v409 = vadd.f32 %v378, %v408
          %s410 = sld [smem:[#allocation9 + $0x180]]
          %v411 = vstv %s410
          %v412 = vmul.f32 %v304, %v411
          %s413 = sld [smem:[#allocation9 + $0x181]]
          %v414 = vstv %s413
          %v415 = vmul.f32 %v306, %v414
          %v416 = vadd.f32 %v412, %v415
          %s417 = sld [smem:[#allocation9 + $0x182]]
          %v418 = vstv %s417
          %v419 = vmul.f32 %v308, %v418
          %v420 = vadd.f32 %v416, %v419
          %s421 = sld [smem:[#allocation9 + $0x183]]
          %v422 = vstv %s421
          %v423 = vmul.f32 %v310, %v422
          %v424 = vadd.f32 %v420, %v423
          %s425 = sld [smem:[#allocation10 + $0x3]]
          %v426 = vstv %s425
          %v427 = vadd.f32 %v424, %v426
          %v428 = vmax.f32 %v427, 0.0
          %s429 = sld [smem:[#allocation12 + $0x3]]
          %v430 = vstv %s429
          %v431 = vmul.f32 %v428, %v430
          %v432 = vadd.f32 %v401, %v431
          %s433 = sld [smem:[#allocation12 + $0x83]]
          %v434 = vstv %s433
          %v435 = vmul.f32 %v428, %v434
          %v436 = vadd.f32 %v405, %v435
          %s437 = sld [smem:[#allocation12 + $0x103]]
          %v438 = vstv %s437
          %v439 = vmul.f32 %v428, %v438
          %v440 = vadd.f32 %v409, %v439
          %s441 = sld [smem:[#allocation9 + $0x200]]
          %v442 = vstv %s441
          %v443 = vmul.f32 %v304, %v442
          %s444 = sld [smem:[#allocation9 + $0x201]]
          %v445 = vstv %s444
          %v446 = vmul.f32 %v306, %v445
          %v447 = vadd.f32 %v443, %v446
          %s448 = sld [smem:[#allocation9 + $0x202]]
          %v449 = vstv %s448
          %v450 = vmul.f32 %v308, %v449
          %v451 = vadd.f32 %v447, %v450
          %s452 = sld [smem:[#allocation9 + $0x203]]
          %v453 = vstv %s452
          %v454 = vmul.f32 %v310, %v453
          %v455 = vadd.f32 %v451, %v454
          %s456 = sld [smem:[#allocation10 + $0x4]]
          %v457 = vstv %s456
          %v458 = vadd.f32 %v455, %v457
          %v459 = vmax.f32 %v458, 0.0
          %s460 = sld [smem:[#allocation12 + $0x4]]
          %v461 = vstv %s460
          %v462 = vmul.f32 %v459, %v461
          %v463 = vadd.f32 %v432, %v462
          %s464 = sld [smem:[#allocation12 + $0x84]]
          %v465 = vstv %s464
          %v466 = vmul.f32 %v459, %v465
          %v467 = vadd.f32 %v436, %v466
          %s468 = sld [smem:[#allocation12 + $0x104]]
          %v469 = vstv %s468
          %v470 = vmul.f32 %v459, %v469
          %v471 = vadd.f32 %v440, %v470
          %s472 = sld [smem:[#allocation9 + $0x280]]
          %v473 = vstv %s472
          %v474 = vmul.f32 %v304, %v473
          %s475 = sld [smem:[#allocation9 + $0x281]]
          %v476 = vstv %s475
          %v477 = vmul.f32 %v306, %v476
          %v478 = vadd.f32 %v474, %v477
          %s479 = sld [smem:[#allocation9 + $0x282]]
          %v480 = vstv %s479
          %v481 = vmul.f32 %v308, %v480
          %v482 = vadd.f32 %v478, %v481
          %s483 = sld [smem:[#allocation9 + $0x283]]
          %v484 = vstv %s483
          %v485 = vmul.f32 %v310, %v484
          %v486 = vadd.f32 %v482, %v485
          %s487 = sld [smem:[#allocation10 + $0x5]]
          %v488 = vstv %s487
          %v489 = vadd.f32 %v486, %v488
          %v490 = vmax.f32 %v489, 0.0
          %s491 = sld [smem:[#allocation12 + $0x5]]
          %v492 = vstv %s491
          %v493 = vmul.f32 %v490, %v492
          %v494 = vadd.f32 %v463, %v493
          %s495 = sld [smem:[#allocation12 + $0x85]]
          %v496 = vstv %s495
          %v497 = vmul.f32 %v490, %v496
          %v498 = vadd.f32 %v467, %v497
          %s499 = sld [smem:[#allocation12 + $0x105]]
          %v500 = vstv %s499
          %v501 = vmul.f32 %v490, %v500
          %v502 = vadd.f32 %v471, %v501
          %s503 = sld [smem:[#allocation9 + $0x300]]
          %v504 = vstv %s503
          %v505 = vmul.f32 %v304, %v504
          %s506 = sld [smem:[#allocation9 + $0x301]]
          %v507 = vstv %s506
          %v508 = vmul.f32 %v306, %v507
          %v509 = vadd.f32 %v505, %v508
          %s510 = sld [smem:[#allocation9 + $0x302]]
          %v511 = vstv %s510
          %v512 = vmul.f32 %v308, %v511
          %v513 = vadd.f32 %v509, %v512
          %s514 = sld [smem:[#allocation9 + $0x303]]
          %v515 = vstv %s514
          %v516 = vmul.f32 %v310, %v515
          %v517 = vadd.f32 %v513, %v516
          %s518 = sld [smem:[#allocation10 + $0x6]]
          %v519 = vstv %s518
          %v520 = vadd.f32 %v517, %v519
          %v521 = vmax.f32 %v520, 0.0
          %s522 = sld [smem:[#allocation12 + $0x6]]
          %v523 = vstv %s522
          %v524 = vmul.f32 %v521, %v523
          %v525 = vadd.f32 %v494, %v524
          %s526 = sld [smem:[#allocation12 + $0x86]]
          %v527 = vstv %s526
          %v528 = vmul.f32 %v521, %v527
          %v529 = vadd.f32 %v498, %v528
          %s530 = sld [smem:[#allocation12 + $0x106]]
          %v531 = vstv %s530
          %v532 = vmul.f32 %v521, %v531
          %v533 = vadd.f32 %v502, %v532
          %s534 = sld [smem:[#allocation9 + $0x380]]
          %v535 = vstv %s534
          %v536 = vmul.f32 %v304, %v535
          %s537 = sld [smem:[#allocation9 + $0x381]]
          %v538 = vstv %s537
          %v539 = vmul.f32 %v306, %v538
          %v540 = vadd.f32 %v536, %v539
          %s541 = sld [smem:[#allocation9 + $0x382]]
          %v542 = vstv %s541
          %v543 = vmul.f32 %v308, %v542
          %v544 = vadd.f32 %v540, %v543
          %s545 = sld [smem:[#allocation9 + $0x383]]
          %v546 = vstv %s545
          %v547 = vmul.f32 %v310, %v546
          %v548 = vadd.f32 %v544, %v547
          %s549 = sld [smem:[#allocation10 + $0x7]]
          %v550 = vstv %s549
          %v551 = vadd.f32 %v548, %v550
          %v552 = vmax.f32 %v551, 0.0
          %s553 = sld [smem:[#allocation12 + $0x7]]
          %v554 = vstv %s553
          %v555 = vmul.f32 %v552, %v554
          %v556 = vadd.f32 %v525, %v555
          %s557 = sld [smem:[#allocation12 + $0x87]]
          %v558 = vstv %s557
          %v559 = vmul.f32 %v552, %v558
          %v560 = vadd.f32 %v529, %v559
          %s561 = sld [smem:[#allocation12 + $0x107]]
          %v562 = vstv %s561
          %v563 = vmul.f32 %v552, %v562
          %v564 = vadd.f32 %v533, %v563
          %v565 = vlaneseq
          %v566 = vshrl.u32 %v565, 7
          %v567 = vlaneseq
          %v568 = vand.u32 %v567, 127
          %s569 = smul.u32 %s28, 8
          %v570 = vstv %s569
          %v571 = vadd.s32 %v570, %v566
          %v572 = vmul.u32 %v571, 128
          %v573 = vadd.s32 %v572, %v568
          %vm574 = vcmp.lt.s32.totalorder %v573, 8
          %v575 = vsel %vm574, %v556, -1e+30
          %v576 = vsel %vm574, %v560, -1e+30
          %v577 = vsel %vm574, %v564, -1e+30
          %v578 = vld [vmem:[#allocation2] sm:$0xff]
          %v579 = vmax.f32 %v578, %v575
          %v580 = vld [vmem:[#allocation3] sm:$0xff]
          %v581 = vsub.f32 %v578, %v579
          %v582 = vmul.f32 %v581, 1.442695
          %v583 = vpow.pop %v582
          %v584 = vmul.f32 %v580, %v583
          %v585 = vsub.f32 %v575, %v579
          %v586 = vmul.f32 %v585, 1.442695
          %v587 = vpow.pop %v586
          %v588 = vadd.f32 %v584, %v587
          %589 = vst [vmem:[#allocation3] sm:$0xff] %v588
          %590 = vst [vmem:[#allocation2] sm:$0xff] %v579
          %s591 = scalar_lea.vmem [#allocation2], 8
          %v592 = vld [vmem:[%s591] sm:$0xff]
          %v593 = vmax.f32 %v592, %v576
          %s594 = scalar_lea.vmem [#allocation3], 8
          %v595 = vld [vmem:[%s594] sm:$0xff]
          %v596 = vsub.f32 %v592, %v593
          %v597 = vmul.f32 %v596, 1.442695
          %v598 = vpow.pop %v597
          %v599 = vmul.f32 %v595, %v598
          %v600 = vsub.f32 %v576, %v593
          %v601 = vmul.f32 %v600, 1.442695
          %v602 = vpow.pop %v601
          %v603 = vadd.f32 %v599, %v602
          %604 = vst [vmem:[%s594] sm:$0xff] %v603
          %605 = vst [vmem:[%s591] sm:$0xff] %v593
          %s606 = scalar_lea.vmem [#allocation2], 16
          %v607 = vld [vmem:[%s606] sm:$0xff]
          %v608 = vmax.f32 %v607, %v577
          %s609 = scalar_lea.vmem [#allocation3], 16
          %v610 = vld [vmem:[%s609] sm:$0xff]
          %v611 = vsub.f32 %v607, %v608
          %v612 = vmul.f32 %v611, 1.442695
          %v613 = vpow.pop %v612
          %v614 = vmul.f32 %v610, %v613
          %v615 = vsub.f32 %v577, %v608
          %v616 = vmul.f32 %v615, 1.442695
          %v617 = vpow.pop %v616
          %v618 = vadd.f32 %v614, %v617
          %619 = vst [vmem:[%s609] sm:$0xff] %v618
          %620 = vst [vmem:[%s606] sm:$0xff] %v608
          %v621 = vld [vmem:[#allocation2] sm:$0xff]
          %v622 = vld [vmem:[#allocation3] sm:$0xff]
          %v623 = vrot.slane %v621, 4
          %v624 = vmax.f32 %v621, %v623
          %v625 = vrot.slane %v624, 2
          %v626 = vmax.f32 %v624, %v625
          %v627 = vrot.slane %v626, 1
          %v628 = vmax.f32 %v626, %v627
          %v629 = vsub.f32 %v621, %v628
          %v630 = vmul.f32 %v629, 1.442695
          %v631 = vpow.pop %v630
          %v632 = vmul.f32 %v622, %v631
          %v633 = vrot.slane %v632, 4
          %v634 = vadd.f32 %v632, %v633
          %v635 = vrot.slane %v634, 2
          %v636 = vadd.f32 %v634, %v635
          %v637 = vrot.slane %v636, 1
          %v638 = vadd.f32 %v636, %v637
          %639 = vmax.xlane.f32.xlu0 %v628
          %v640 = vpop.xlane.xlu0 %639
          %v641 = vsub.f32 %v628, %v640
          %v642 = vmul.f32 %v641, 1.442695
          %v643 = vpow.pop %v642
          %v644 = vmul.f32 %v638, %v643
          %645 = vadd.xlane.f32.xlu0 %v644
          %v646 = vpop.xlane.xlu0 %645
          %v647 = vlog2.pop %v646
          %v648 = vmul.f32 %v647, 0.6931472
          %v649 = vadd.f32 %v640, %v648
          %650 = vst [vmem:[#allocation4] sm:$0x1] %v649
          %v651 = vld [vmem:[%s591] sm:$0xff]
          %v652 = vld [vmem:[%s594] sm:$0xff]
          %v653 = vrot.slane %v651, 4
          %v654 = vmax.f32 %v651, %v653
          %v655 = vrot.slane %v654, 2
          %v656 = vmax.f32 %v654, %v655
          %v657 = vrot.slane %v656, 1
          %v658 = vmax.f32 %v656, %v657
          %v659 = vsub.f32 %v651, %v658
          %v660 = vmul.f32 %v659, 1.442695
          %v661 = vpow.pop %v660
          %v662 = vmul.f32 %v652, %v661
          %v663 = vrot.slane %v662, 4
          %v664 = vadd.f32 %v662, %v663
          %v665 = vrot.slane %v664, 2
          %v666 = vadd.f32 %v664, %v665
          %v667 = vrot.slane %v666, 1
          %v668 = vadd.f32 %v666, %v667
          %669 = vmax.xlane.f32.xlu0 %v658
          %v670 = vpop.xlane.xlu0 %669
          %v671 = vsub.f32 %v658, %v670
          %v672 = vmul.f32 %v671, 1.442695
          %v673 = vpow.pop %v672
          %v674 = vmul.f32 %v668, %v673
          %675 = vadd.xlane.f32.xlu0 %v674
          %v676 = vpop.xlane.xlu0 %675
          %v677 = vlog2.pop %v676
          %v678 = vmul.f32 %v677, 0.6931472
          %v679 = vadd.f32 %v670, %v678
          %s680 = scalar_lea.vmem [#allocation4], 1
          %681 = vst [vmem:[%s680] sm:$0x1] %v679
          %v682 = vld [vmem:[%s606] sm:$0xff]
          %v683 = vld [vmem:[%s609] sm:$0xff]
          %v684 = vrot.slane %v682, 4
          %v685 = vmax.f32 %v682, %v684
          %v686 = vrot.slane %v685, 2
          %v687 = vmax.f32 %v685, %v686
          %v688 = vrot.slane %v687, 1
          %v689 = vmax.f32 %v687, %v688
          %v690 = vsub.f32 %v682, %v689
          %v691 = vmul.f32 %v690, 1.442695
          %v692 = vpow.pop %v691
          %v693 = vmul.f32 %v683, %v692
          %v694 = vrot.slane %v693, 4
          %v695 = vadd.f32 %v693, %v694
          %v696 = vrot.slane %v695, 2
          %v697 = vadd.f32 %v695, %v696
          %v698 = vrot.slane %v697, 1
          %v699 = vadd.f32 %v697, %v698
          %700 = vmax.xlane.f32.xlu0 %v689
          %v701 = vpop.xlane.xlu0 %700
          %v702 = vsub.f32 %v689, %v701
          %v703 = vmul.f32 %v702, 1.442695
          %v704 = vpow.pop %v703
          %v705 = vmul.f32 %v699, %v704
          %706 = vadd.xlane.f32.xlu0 %v705
          %v707 = vpop.xlane.xlu0 %706
          %v708 = vlog2.pop %v707
          %v709 = vmul.f32 %v708, 0.6931472
          %v710 = vadd.f32 %v701, %v709
          %s711 = scalar_lea.vmem [#allocation4], 2
          %712 = vst [vmem:[%s711] sm:$0x1] %v710
        $region64: #{tpu_custom_call.1} parent=39 // pred_fallthru
          _
        %p713 = scmp.eq.s32.totalorder %s27, 1
        %p714 = pnand %p713, %p292
        %p715 = pneg %p714
        // Predicated region
        $region65: #{tpu_custom_call.1} parent=39 // pred_check
          _
        $region66: #{tpu_custom_call.1} parent=39 // pred_check_branch
          %717 = sbr.rel (%p714) target = $region68
        $region67: #{tpu_custom_call.1} parent=39 // pred_region
          %v718 = vld [vmem:[#allocation5] sm:$0xff]
          %s719 = scalar_lea.vmem [#allocation5], 8
          %v720 = vld [vmem:[%s719] sm:$0xff]
          %s721 = scalar_lea.vmem [#allocation5], 16
          %v722 = vld [vmem:[%s721] sm:$0xff]
          %s723 = scalar_lea.vmem [#allocation5], 24
          %v724 = vld [vmem:[%s723] sm:$0xff]
          %s725 = sld [smem:[#allocation9]]
          %v726 = vstv %s725
          %v727 = vmul.f32 %v718, %v726
          %s728 = sld [smem:[#allocation9 + $0x1]]
          %v729 = vstv %s728
          %v730 = vmul.f32 %v720, %v729
          %v731 = vadd.f32 %v727, %v730
          %s732 = sld [smem:[#allocation9 + $0x2]]
          %v733 = vstv %s732
          %v734 = vmul.f32 %v722, %v733
          %v735 = vadd.f32 %v731, %v734
          %s736 = sld [smem:[#allocation9 + $0x3]]
          %v737 = vstv %s736
          %v738 = vmul.f32 %v724, %v737
          %v739 = vadd.f32 %v735, %v738
          %s740 = sld [smem:[#allocation10]]
          %v741 = vstv %s740
          %v742 = vadd.f32 %v739, %v741
          %v743 = vmax.f32 %v742, 0.0
          %s744 = sld [smem:[#allocation12]]
          %v745 = vstv %s744
          %v746 = vmul.f32 %v743, %v745
          %s747 = sld [smem:[#allocation13]]
          %v748 = vstv %s747
          %v749 = vadd.f32 %v746, %v748
          %s750 = sld [smem:[#allocation12 + $0x80]]
          %v751 = vstv %s750
          %v752 = vmul.f32 %v743, %v751
          %s753 = sld [smem:[#allocation13 + $0x1]]
          %v754 = vstv %s753
          %v755 = vadd.f32 %v752, %v754
          %s756 = sld [smem:[#allocation12 + $0x100]]
          %v757 = vstv %s756
          %v758 = vmul.f32 %v743, %v757
          %s759 = sld [smem:[#allocation13 + $0x2]]
          %v760 = vstv %s759
          %v761 = vadd.f32 %v758, %v760
          %s762 = sld [smem:[#allocation9 + $0x80]]
          %v763 = vstv %s762
          %v764 = vmul.f32 %v718, %v763
          %s765 = sld [smem:[#allocation9 + $0x81]]
          %v766 = vstv %s765
          %v767 = vmul.f32 %v720, %v766
          %v768 = vadd.f32 %v764, %v767
          %s769 = sld [smem:[#allocation9 + $0x82]]
          %v770 = vstv %s769
          %v771 = vmul.f32 %v722, %v770
          %v772 = vadd.f32 %v768, %v771
          %s773 = sld [smem:[#allocation9 + $0x83]]
          %v774 = vstv %s773
          %v775 = vmul.f32 %v724, %v774
          %v776 = vadd.f32 %v772, %v775
          %s777 = sld [smem:[#allocation10 + $0x1]]
          %v778 = vstv %s777
          %v779 = vadd.f32 %v776, %v778
          %v780 = vmax.f32 %v779, 0.0
          %s781 = sld [smem:[#allocation12 + $0x1]]
          %v782 = vstv %s781
          %v783 = vmul.f32 %v780, %v782
          %v784 = vadd.f32 %v749, %v783
          %s785 = sld [smem:[#allocation12 + $0x81]]
          %v786 = vstv %s785
          %v787 = vmul.f32 %v780, %v786
          %v788 = vadd.f32 %v755, %v787
          %s789 = sld [smem:[#allocation12 + $0x101]]
          %v790 = vstv %s789
          %v791 = vmul.f32 %v780, %v790
          %v792 = vadd.f32 %v761, %v791
          %s793 = sld [smem:[#allocation9 + $0x100]]
          %v794 = vstv %s793
          %v795 = vmul.f32 %v718, %v794
          %s796 = sld [smem:[#allocation9 + $0x101]]
          %v797 = vstv %s796
          %v798 = vmul.f32 %v720, %v797
          %v799 = vadd.f32 %v795, %v798
          %s800 = sld [smem:[#allocation9 + $0x102]]
          %v801 = vstv %s800
          %v802 = vmul.f32 %v722, %v801
          %v803 = vadd.f32 %v799, %v802
          %s804 = sld [smem:[#allocation9 + $0x103]]
          %v805 = vstv %s804
          %v806 = vmul.f32 %v724, %v805
          %v807 = vadd.f32 %v803, %v806
          %s808 = sld [smem:[#allocation10 + $0x2]]
          %v809 = vstv %s808
          %v810 = vadd.f32 %v807, %v809
          %v811 = vmax.f32 %v810, 0.0
          %s812 = sld [smem:[#allocation12 + $0x2]]
          %v813 = vstv %s812
          %v814 = vmul.f32 %v811, %v813
          %v815 = vadd.f32 %v784, %v814
          %s816 = sld [smem:[#allocation12 + $0x82]]
          %v817 = vstv %s816
          %v818 = vmul.f32 %v811, %v817
          %v819 = vadd.f32 %v788, %v818
          %s820 = sld [smem:[#allocation12 + $0x102]]
          %v821 = vstv %s820
          %v822 = vmul.f32 %v811, %v821
          %v823 = vadd.f32 %v792, %v822
          %s824 = sld [smem:[#allocation9 + $0x180]]
          %v825 = vstv %s824
          %v826 = vmul.f32 %v718, %v825
          %s827 = sld [smem:[#allocation9 + $0x181]]
          %v828 = vstv %s827
          %v829 = vmul.f32 %v720, %v828
          %v830 = vadd.f32 %v826, %v829
          %s831 = sld [smem:[#allocation9 + $0x182]]
          %v832 = vstv %s831
          %v833 = vmul.f32 %v722, %v832
          %v834 = vadd.f32 %v830, %v833
          %s835 = sld [smem:[#allocation9 + $0x183]]
          %v836 = vstv %s835
          %v837 = vmul.f32 %v724, %v836
          %v838 = vadd.f32 %v834, %v837
          %s839 = sld [smem:[#allocation10 + $0x3]]
          %v840 = vstv %s839
          %v841 = vadd.f32 %v838, %v840
          %v842 = vmax.f32 %v841, 0.0
          %s843 = sld [smem:[#allocation12 + $0x3]]
          %v844 = vstv %s843
          %v845 = vmul.f32 %v842, %v844
          %v846 = vadd.f32 %v815, %v845
          %s847 = sld [smem:[#allocation12 + $0x83]]
          %v848 = vstv %s847
          %v849 = vmul.f32 %v842, %v848
          %v850 = vadd.f32 %v819, %v849
          %s851 = sld [smem:[#allocation12 + $0x103]]
          %v852 = vstv %s851
          %v853 = vmul.f32 %v842, %v852
          %v854 = vadd.f32 %v823, %v853
          %s855 = sld [smem:[#allocation9 + $0x200]]
          %v856 = vstv %s855
          %v857 = vmul.f32 %v718, %v856
          %s858 = sld [smem:[#allocation9 + $0x201]]
          %v859 = vstv %s858
          %v860 = vmul.f32 %v720, %v859
          %v861 = vadd.f32 %v857, %v860
          %s862 = sld [smem:[#allocation9 + $0x202]]
          %v863 = vstv %s862
          %v864 = vmul.f32 %v722, %v863
          %v865 = vadd.f32 %v861, %v864
          %s866 = sld [smem:[#allocation9 + $0x203]]
          %v867 = vstv %s866
          %v868 = vmul.f32 %v724, %v867
          %v869 = vadd.f32 %v865, %v868
          %s870 = sld [smem:[#allocation10 + $0x4]]
          %v871 = vstv %s870
          %v872 = vadd.f32 %v869, %v871
          %v873 = vmax.f32 %v872, 0.0
          %s874 = sld [smem:[#allocation12 + $0x4]]
          %v875 = vstv %s874
          %v876 = vmul.f32 %v873, %v875
          %v877 = vadd.f32 %v846, %v876
          %s878 = sld [smem:[#allocation12 + $0x84]]
          %v879 = vstv %s878
          %v880 = vmul.f32 %v873, %v879
          %v881 = vadd.f32 %v850, %v880
          %s882 = sld [smem:[#allocation12 + $0x104]]
          %v883 = vstv %s882
          %v884 = vmul.f32 %v873, %v883
          %v885 = vadd.f32 %v854, %v884
          %s886 = sld [smem:[#allocation9 + $0x280]]
          %v887 = vstv %s886
          %v888 = vmul.f32 %v718, %v887
          %s889 = sld [smem:[#allocation9 + $0x281]]
          %v890 = vstv %s889
          %v891 = vmul.f32 %v720, %v890
          %v892 = vadd.f32 %v888, %v891
          %s893 = sld [smem:[#allocation9 + $0x282]]
          %v894 = vstv %s893
          %v895 = vmul.f32 %v722, %v894
          %v896 = vadd.f32 %v892, %v895
          %s897 = sld [smem:[#allocation9 + $0x283]]
          %v898 = vstv %s897
          %v899 = vmul.f32 %v724, %v898
          %v900 = vadd.f32 %v896, %v899
          %s901 = sld [smem:[#allocation10 + $0x5]]
          %v902 = vstv %s901
          %v903 = vadd.f32 %v900, %v902
          %v904 = vmax.f32 %v903, 0.0
          %s905 = sld [smem:[#allocation12 + $0x5]]
          %v906 = vstv %s905
          %v907 = vmul.f32 %v904, %v906
          %v908 = vadd.f32 %v877, %v907
          %s909 = sld [smem:[#allocation12 + $0x85]]
          %v910 = vstv %s909
          %v911 = vmul.f32 %v904, %v910
          %v912 = vadd.f32 %v881, %v911
          %s913 = sld [smem:[#allocation12 + $0x105]]
          %v914 = vstv %s913
          %v915 = vmul.f32 %v904, %v914
          %v916 = vadd.f32 %v885, %v915
          %s917 = sld [smem:[#allocation9 + $0x300]]
          %v918 = vstv %s917
          %v919 = vmul.f32 %v718, %v918
          %s920 = sld [smem:[#allocation9 + $0x301]]
          %v921 = vstv %s920
          %v922 = vmul.f32 %v720, %v921
          %v923 = vadd.f32 %v919, %v922
          %s924 = sld [smem:[#allocation9 + $0x302]]
          %v925 = vstv %s924
          %v926 = vmul.f32 %v722, %v925
          %v927 = vadd.f32 %v923, %v926
          %s928 = sld [smem:[#allocation9 + $0x303]]
          %v929 = vstv %s928
          %v930 = vmul.f32 %v724, %v929
          %v931 = vadd.f32 %v927, %v930
          %s932 = sld [smem:[#allocation10 + $0x6]]
          %v933 = vstv %s932
          %v934 = vadd.f32 %v931, %v933
          %v935 = vmax.f32 %v934, 0.0
          %s936 = sld [smem:[#allocation12 + $0x6]]
          %v937 = vstv %s936
          %v938 = vmul.f32 %v935, %v937
          %v939 = vadd.f32 %v908, %v938
          %s940 = sld [smem:[#allocation12 + $0x86]]
          %v941 = vstv %s940
          %v942 = vmul.f32 %v935, %v941
          %v943 = vadd.f32 %v912, %v942
          %s944 = sld [smem:[#allocation12 + $0x106]]
          %v945 = vstv %s944
          %v946 = vmul.f32 %v935, %v945
          %v947 = vadd.f32 %v916, %v946
          %s948 = sld [smem:[#allocation9 + $0x380]]
          %v949 = vstv %s948
          %v950 = vmul.f32 %v718, %v949
          %s951 = sld [smem:[#allocation9 + $0x381]]
          %v952 = vstv %s951
          %v953 = vmul.f32 %v720, %v952
          %v954 = vadd.f32 %v950, %v953
          %s955 = sld [smem:[#allocation9 + $0x382]]
          %v956 = vstv %s955
          %v957 = vmul.f32 %v722, %v956
          %v958 = vadd.f32 %v954, %v957
          %s959 = sld [smem:[#allocation9 + $0x383]]
          %v960 = vstv %s959
          %v961 = vmul.f32 %v724, %v960
          %v962 = vadd.f32 %v958, %v961
          %s963 = sld [smem:[#allocation10 + $0x7]]
          %v964 = vstv %s963
          %v965 = vadd.f32 %v962, %v964
          %v966 = vmax.f32 %v965, 0.0
          %s967 = sld [smem:[#allocation12 + $0x7]]
          %v968 = vstv %s967
          %v969 = vmul.f32 %v966, %v968
          %v970 = vadd.f32 %v939, %v969
          %s971 = sld [smem:[#allocation12 + $0x87]]
          %v972 = vstv %s971
          %v973 = vmul.f32 %v966, %v972
          %v974 = vadd.f32 %v943, %v973
          %s975 = sld [smem:[#allocation12 + $0x107]]
          %v976 = vstv %s975
          %v977 = vmul.f32 %v966, %v976
          %v978 = vadd.f32 %v947, %v977
          %v979 = vlaneseq
          %v980 = vshrl.u32 %v979, 7
          %v981 = vlaneseq
          %v982 = vand.u32 %v981, 127
          %s983 = smul.u32 %s28, 8
          %v984 = vstv %s983
          %v985 = vadd.s32 %v984, %v980
          %v986 = vmul.u32 %v985, 128
          %v987 = vadd.s32 %v986, %v982
          %vm988 = vcmp.lt.s32.totalorder %v987, 8
          %v989 = vld [vmem:[#allocation4] sm:$0x1]
          %v991 = vlaneseq
          %v992 = vshrl.u32 %v991, 7
          %v993 = vsub.s32 0, %v992
          %v994 = vrot.slane %v989, %v993
          %v996 = vsub.f32 %v970, %v994
          %v997 = vmul.f32 %v996, 1.442695
          %v998 = vpow.pop %v997
          %v999 = vsel %vm988, %v998, 0.0
          %1000 = vst [vmem:[%s290] sm:$0xff] %v999
          %s1001 = scalar_lea.vmem [#allocation4], 1
          %v1002 = vld [vmem:[%s1001] sm:$0x1]
          %v1004 = vlaneseq
          %v1005 = vshrl.u32 %v1004, 7
          %v1006 = vsub.s32 0, %v1005
          %v1007 = vrot.slane %v1002, %v1006
          %v1009 = vsub.f32 %v974, %v1007
          %v1010 = vmul.f32 %v1009, 1.442695
          %v1011 = vpow.pop %v1010
          %v1012 = vsel %vm988, %v1011, 0.0
          %s1013 = scalar_lea.vmem %s290, 8 [#allocation15]
          %1014 = vst [vmem:[%s1013] sm:$0xff] %v1012
          %s1015 = scalar_lea.vmem [#allocation4], 2
          %v1016 = vld [vmem:[%s1015] sm:$0x1]
          %v1018 = vlaneseq
          %v1019 = vshrl.u32 %v1018, 7
          %v1020 = vsub.s32 0, %v1019
          %v1021 = vrot.slane %v1016, %v1020
          %v1023 = vsub.f32 %v978, %v1021
          %v1024 = vmul.f32 %v1023, 1.442695
          %v1025 = vpow.pop %v1024
          %v1026 = vsel %vm988, %v1025, 0.0
          %s1027 = scalar_lea.vmem %s290, 16 [#allocation15]
          %1028 = vst [vmem:[%s1027] sm:$0xff] %v1026
        $region68: #{tpu_custom_call.1} parent=39 // pred_fallthru
          _
        %s1029 = sand.u32 %s155, 1
        %s1030 = scalar_lea.sflag [#allocation7], %s1029
        %s1031 = sand.u32 %s155, 1
        %s1032 = smul.addr %s1031, 24
        %s1033 = scalar_lea.vmem [#allocation15], %s1032
        // Predicated region
        $region69: #{tpu_custom_call.1} parent=39 // pred_check
          %p1034 = pneg %p165
        $region70: #{tpu_custom_call.1} parent=39 // pred_check_branch
          %1036 = sbr.rel (%p1034) target = $region72
        $region71: #{tpu_custom_call.1} parent=39 // pred_region
          %s1037 = smul.u32 %s28, %s27
          %s1039 = ssub.s32 384, 384
          %1040 = vsyncadd %s1030, %s1039
          %s1041 = smul.addr %s1037, 128
          %s1042 = scalar_lea.hbm %s5, %s1041
          %s1043 = sshll.u32 %s1033, 4
          %s1044 = int_to_ptr.vmem [resolvable:$true] %s1043
          %1049 = dma.vmem_to_hbm [thread:$0]  %s1044, 384, %s1042, %s1030, 128, 128, 8
        $region72: #{tpu_custom_call.1} parent=39 // pred_fallthru
          _
      $region40: #{tpu_custom_call.1} parent=5 // pred_fallthru
        _
      %p1050 = scmp.le.s32.totalorder 2, %s18
      // Predicated region
      $region73: #{tpu_custom_call.1} parent=5 // pred_check
        %p1051 = pneg %p1050
      $region74: #{tpu_custom_call.1} parent=5 // pred_check_branch
        %1053 = sbr.rel (%p1051) target = $region76
      $region75: #{tpu_custom_call.1} parent=5 // pred_region
        %s1054 = ssub.s32 %s18, 2
        // Predicated region
        $region77: #{tpu_custom_call.1} parent=75 // pred_check
          %p1055 = pneg %p171
        $region78: #{tpu_custom_call.1} parent=75 // pred_check_branch
          %1057 = sbr.rel (%p1055) target = $region80
        $region79: #{tpu_custom_call.1} parent=75 // pred_region
          %s1058 = sand.u32 %s156, 1
          %s1059 = scalar_lea.sflag [#allocation7], %s1058
          %s1060 = sand.u32 %s156, 1
          %s1061 = smul.addr %s1060, 24
          %s1062 = scalar_lea.vmem [#allocation15], %s1061
          %1063 = dma.done %s1059, 384
        $region80: #{tpu_custom_call.1} parent=75 // pred_fallthru
          _
      $region76: #{tpu_custom_call.1} parent=5 // pred_fallthru
        _
    $region6: #{tpu_custom_call.1} parent=1 // loop_footer
      %s22 = sadd.s32 1, %s18
    $region7: #{tpu_custom_call.1} parent=1 // loop_footer_branch
      %17 = sbr.rel target = $region3
    $region8: #{tpu_custom_call.1} parent=1 // loop_exit
      _
    %1064 = vsyncpa [#allocation6], 1
    %s1065 = scalar_lea.sflag [#allocation6], 1
    %1066 = vsyncpa %s1065, 1
    %1067 = vsyncpa [#allocation7], 1
    %s1068 = scalar_lea.sflag [#allocation7], 1
    %1069 = vsyncpa %s1068, 1
    %1070 = vsyncpa [#allocation8], 1
    %s1071 = scalar_lea.sflag [#allocation8], 1
    %1072 = vsyncpa %s1071, 1
    %1073 = vsyncpa [#allocation11], 1
    %1074 = vsyncpa [#allocation14], 1

</llo_original>
